<compile_context>
chip_gen: v7x
topology: tpu7x:2x2x1
jax: 0.10.0
libtpu: 0.0.40
codegen_flags: <defaults>
</compile_context>

<pallas_src>
import functools

import jax
import jax.numpy as jnp
from jax.experimental import pallas as pl


def encoder_kernel(x_ref, w1_ref, b1_ref, w2_ref, b2_ref, gamma_ref, beta_ref,
                   wh_ref, bh_ref, eps_ref, z_ref, *, latent_dim):
    # ---- Linear(D_in, 512) + LeakyReLU(0.2) -------------------------------
    x = x_ref[...]                                                 # bf16 (B, D_in)
    h = jnp.dot(x, w1_ref[...], preferred_element_type=jnp.float32) + b1_ref[...]
    h = jnp.where(h > 0, h, 0.2 * h)                               # f32

    # ---- Linear(512, 512) --------------------------------------------------
    h = jnp.dot(h.astype(jnp.bfloat16), w2_ref[...],
                preferred_element_type=jnp.float32) + b2_ref[...]

    # ---- BatchNorm1d(512), training mode (biased batch stats), one pass ---
    m1 = jnp.mean(h, axis=0, keepdims=True)
    m2 = jnp.mean(h * h, axis=0, keepdims=True)
    var = m2 - m1 * m1
    h = (h - m1) * jax.lax.rsqrt(var + 1e-5) * gamma_ref[...] + beta_ref[...]

    # ---- LeakyReLU(0.2) ----------------------------------------------------
    h = jnp.where(h > 0, h, 0.2 * h)

    # ---- Fused mu|logvar head: single (512, 2L) matmul ---------------------
    head = jnp.dot(h.astype(jnp.bfloat16), wh_ref[...],
                   preferred_element_type=jnp.float32) + bh_ref[...]
    mu = head[:, :latent_dim]
    logvar = head[:, latent_dim:]

    # ---- Reparameterization: z = eps * exp(logvar / 2) + mu ---------------
    z_ref[...] = eps_ref[...] * jnp.exp(logvar * 0.5) + mu


def _full_spec(shape):
    # Full-array block: everything fits comfortably in VMEM at these sizes.
    return pl.BlockSpec(shape, lambda: (0,) * len(shape))


@functools.partial(jax.jit, static_argnames=("latent_dim",))
def encoder_forward(img, params, eps, *, latent_dim):
    B = img.shape[0]
    x_flat = img.reshape(B, -1).astype(jnp.bfloat16)   # == torch img.view(B, -1)

    (w1, b1, w2, b2, gamma, beta, wh, bh) = params
    operands = (x_flat, w1, b1, w2, b2, gamma, beta, wh, bh, eps)

    z = pl.pallas_call(
        functools.partial(encoder_kernel, latent_dim=latent_dim),
        out_shape=jax.ShapeDtypeStruct((B, latent_dim), jnp.float32),
        in_specs=[_full_spec(op.shape) for op in operands],
        out_specs=_full_spec((B, latent_dim)),
    )(*operands)
    return z


def init_params(key, d_in, latent_dim):
    """Deterministic PyTorch-style (uniform +/- 1/sqrt(fan_in)) init.

    Weights are stored as (in_features, out_features) bfloat16 so the kernel
    does x @ W on the MXU with halved HBM traffic.  Biases / BN affine stay
    float32 row vectors shaped (1, N).  The mu and logvar heads are fused
    into a single (512, 2*latent_dim) weight / (1, 2*latent_dim) bias.
    """
    ks = jax.random.split(key, 8)

    def lin(kw, kb, fan_in, fan_out):
        bound = 1.0 / jnp.sqrt(jnp.float32(fan_in))
        w = jax.random.uniform(kw, (fan_in, fan_out), jnp.float32, -bound, bound)
        b = jax.random.uniform(kb, (1, fan_out), jnp.float32, -bound, bound)
        return w, b

    w1, b1 = lin(ks[0], ks[1], d_in, 512)
    w2, b2 = lin(ks[2], ks[3], 512, 512)
    gamma = jnp.ones((1, 512), jnp.float32)    # BatchNorm1d weight
    beta = jnp.zeros((1, 512), jnp.float32)    # BatchNorm1d bias
    wmu, bmu = lin(ks[4], ks[5], 512, latent_dim)
    wlv, blv = lin(ks[6], ks[7], 512, latent_dim)

    # Fused head (mu | logvar) and bf16 weight storage.
    wh = jnp.concatenate([wmu, wlv], axis=1)
    bh = jnp.concatenate([bmu, blv], axis=1)
    return (w1.astype(jnp.bfloat16), b1,
            w2.astype(jnp.bfloat16), b2,
            gamma, beta,
            wh.astype(jnp.bfloat16), bh)


def encoder_reference(img, params, eps, latent_dim):
    """Pure-JAX reference mirroring the kernel's arithmetic (same bf16 casts)."""
    B = img.shape[0]
    x = img.reshape(B, -1).astype(jnp.bfloat16)
    w1, b1, w2, b2, gamma, beta, wh, bh = params
    h = jnp.dot(x, w1, preferred_element_type=jnp.float32) + b1
    h = jnp.where(h > 0, h, 0.2 * h)
    h = jnp.dot(h.astype(jnp.bfloat16), w2, preferred_element_type=jnp.float32) + b2
    m1 = jnp.mean(h, axis=0, keepdims=True)
    var = jnp.mean(h * h, axis=0, keepdims=True) - m1 * m1
    h = (h - m1) * jax.lax.rsqrt(var + 1e-5) * gamma + beta
    h = jnp.where(h > 0, h, 0.2 * h)
    head = jnp.dot(h.astype(jnp.bfloat16), wh, preferred_element_type=jnp.float32) + bh
    mu, logvar = head[:, :latent_dim], head[:, latent_dim:]
    return eps * jnp.exp(logvar * 0.5) + mu


if __name__ == "__main__":
    B, C, H, W = 8, 1, 16, 16        # img_shape = (1, 16, 16) -> prod = 256
    latent_dim = 16
    d_in = C * H * W

    key = jax.random.PRNGKey(0)
    k_img, k_param, k_eps = jax.random.split(key, 3)

    img = jax.random.normal(k_img, (B, C, H, W), jnp.float32)        # NCHW
    params = init_params(k_param, d_in, latent_dim)
    # sampled_z ~ N(0, 1) (deterministic here, stands in for np.random.normal)
    eps = jax.random.normal(k_eps, (B, latent_dim), jnp.float32)

    z = encoder_forward(img, params, eps, latent_dim=latent_dim)
    jax.block_until_ready(z)

    z_ref = encoder_reference(img, params, eps, latent_dim)
    assert z.shape == (B, latent_dim) and z.dtype == jnp.float32
    assert bool(jnp.all(jnp.isfinite(z)))
    assert bool(jnp.allclose(z, z_ref, atol=5e-2, rtol=5e-2))
    print("KERNEL_OK")
</pallas_src>

<mosaic_0001>
module attributes {stable_mosaic.version = 11 : i64} {
  func.func @encoder_kernel(%arg0: memref<8x256xbf16, #tpu.memory_space<vmem>>, %arg1: memref<256x512xbf16, #tpu.memory_space<vmem>>, %arg2: memref<1x512xf32, #tpu.memory_space<vmem>>, %arg3: memref<512x512xbf16, #tpu.memory_space<vmem>>, %arg4: memref<1x512xf32, #tpu.memory_space<vmem>>, %arg5: memref<1x512xf32, #tpu.memory_space<vmem>>, %arg6: memref<1x512xf32, #tpu.memory_space<vmem>>, %arg7: memref<512x32xbf16, #tpu.memory_space<vmem>>, %arg8: memref<1x32xf32, #tpu.memory_space<vmem>>, %arg9: memref<8x16xf32, #tpu.memory_space<vmem>>, %arg10: memref<8x16xf32, #tpu.memory_space<vmem>>) attributes {dimension_semantics = [], scalar_prefetch = 0 : i64, scratch_operands = 0 : i64, tpu.core_type = #tpu.core_type<tc>} {
    %c0 = arith.constant 0 : index
    %c0_0 = arith.constant 0 : index
    %0 = vector.load %arg0[%c0, %c0_0] : memref<8x256xbf16, #tpu.memory_space<vmem>>, vector<8x256xbf16>
    %c0_1 = arith.constant 0 : index
    %c0_2 = arith.constant 0 : index
    %1 = vector.load %arg1[%c0_1, %c0_2] : memref<256x512xbf16, #tpu.memory_space<vmem>>, vector<256x512xbf16>
    %cst = arith.constant dense<0.000000e+00> : vector<8x512xf32>
    %2 = tpu.matmul %0, %1, %cst {dimension_numbers = #tpu.dot_dimension_numbers<[1], [0], [0], [1], [0, 0, 1, 1], [], []>} : vector<8x256xbf16>, vector<256x512xbf16>, vector<8x512xf32> -> vector<8x512xf32>
    %c0_3 = arith.constant 0 : index
    %c0_4 = arith.constant 0 : index
    %3 = vector.load %arg2[%c0_3, %c0_4] : memref<1x512xf32, #tpu.memory_space<vmem>>, vector<1x512xf32>
    %4 = vector.broadcast %3 : vector<1x512xf32> to vector<8x512xf32>
    %5 = arith.addf %2, %4 : vector<8x512xf32>
    %cst_5 = arith.constant 0.000000e+00 : f32
    %6 = vector.broadcast %cst_5 : f32 to vector<8x512xf32>
    %7 = arith.cmpf ogt, %5, %6 : vector<8x512xf32>
    %cst_6 = arith.constant 2.000000e-01 : f32
    %8 = vector.broadcast %cst_6 : f32 to vector<8x512xf32>
    %9 = arith.mulf %8, %5 : vector<8x512xf32>
    %10 = arith.select %7, %5, %9 : vector<8x512xi1>, vector<8x512xf32>
    %11 = arith.truncf %10 : vector<8x512xf32> to vector<8x512xbf16>
    %c0_7 = arith.constant 0 : index
    %c0_8 = arith.constant 0 : index
    %12 = vector.load %arg3[%c0_7, %c0_8] : memref<512x512xbf16, #tpu.memory_space<vmem>>, vector<512x512xbf16>
    %cst_9 = arith.constant dense<0.000000e+00> : vector<8x512xf32>
    %13 = tpu.matmul %11, %12, %cst_9 {dimension_numbers = #tpu.dot_dimension_numbers<[1], [0], [0], [1], [0, 0, 1, 1], [], []>} : vector<8x512xbf16>, vector<512x512xbf16>, vector<8x512xf32> -> vector<8x512xf32>
    %c0_10 = arith.constant 0 : index
    %c0_11 = arith.constant 0 : index
    %14 = vector.load %arg4[%c0_10, %c0_11] : memref<1x512xf32, #tpu.memory_space<vmem>>, vector<1x512xf32>
    %15 = vector.broadcast %14 : vector<1x512xf32> to vector<8x512xf32>
    %16 = arith.addf %13, %15 : vector<8x512xf32>
    %cst_12 = arith.constant dense<0.000000e+00> : vector<512xf32>
    %17 = vector.multi_reduction <add>, %16, %cst_12 [0] : vector<8x512xf32> to vector<512xf32>
    %18 = vector.shape_cast %17 : vector<512xf32> to vector<1x512xf32>
    %cst_13 = arith.constant 8.000000e+00 : f32
    %19 = vector.broadcast %cst_13 : f32 to vector<1x512xf32>
    %20 = arith.divf %18, %19 : vector<1x512xf32>
    %21 = arith.mulf %16, %16 : vector<8x512xf32>
    %cst_14 = arith.constant dense<0.000000e+00> : vector<512xf32>
    %22 = vector.multi_reduction <add>, %21, %cst_14 [0] : vector<8x512xf32> to vector<512xf32>
    %23 = vector.shape_cast %22 : vector<512xf32> to vector<1x512xf32>
    %cst_15 = arith.constant 8.000000e+00 : f32
    %24 = vector.broadcast %cst_15 : f32 to vector<1x512xf32>
    %25 = arith.divf %23, %24 : vector<1x512xf32>
    %26 = arith.mulf %20, %20 : vector<1x512xf32>
    %27 = arith.subf %25, %26 : vector<1x512xf32>
    %28 = vector.broadcast %20 : vector<1x512xf32> to vector<8x512xf32>
    %29 = arith.subf %16, %28 : vector<8x512xf32>
    %cst_16 = arith.constant 9.99999974E-6 : f32
    %30 = vector.broadcast %cst_16 : f32 to vector<1x512xf32>
    %31 = arith.addf %27, %30 : vector<1x512xf32>
    %32 = math.rsqrt %31 : vector<1x512xf32>
    %33 = vector.broadcast %32 : vector<1x512xf32> to vector<8x512xf32>
    %34 = arith.mulf %29, %33 : vector<8x512xf32>
    %c0_17 = arith.constant 0 : index
    %c0_18 = arith.constant 0 : index
    %35 = vector.load %arg5[%c0_17, %c0_18] : memref<1x512xf32, #tpu.memory_space<vmem>>, vector<1x512xf32>
    %36 = vector.broadcast %35 : vector<1x512xf32> to vector<8x512xf32>
    %37 = arith.mulf %34, %36 : vector<8x512xf32>
    %c0_19 = arith.constant 0 : index
    %c0_20 = arith.constant 0 : index
    %38 = vector.load %arg6[%c0_19, %c0_20] : memref<1x512xf32, #tpu.memory_space<vmem>>, vector<1x512xf32>
    %39 = vector.broadcast %38 : vector<1x512xf32> to vector<8x512xf32>
    %40 = arith.addf %37, %39 : vector<8x512xf32>
    %cst_21 = arith.constant 0.000000e+00 : f32
    %41 = vector.broadcast %cst_21 : f32 to vector<8x512xf32>
    %42 = arith.cmpf ogt, %40, %41 : vector<8x512xf32>
    %cst_22 = arith.constant 2.000000e-01 : f32
    %43 = vector.broadcast %cst_22 : f32 to vector<8x512xf32>
    %44 = arith.mulf %43, %40 : vector<8x512xf32>
    %45 = arith.select %42, %40, %44 : vector<8x512xi1>, vector<8x512xf32>
    %46 = arith.truncf %45 : vector<8x512xf32> to vector<8x512xbf16>
    %c0_23 = arith.constant 0 : index
    %c0_24 = arith.constant 0 : index
    %47 = vector.load %arg7[%c0_23, %c0_24] : memref<512x32xbf16, #tpu.memory_space<vmem>>, vector<512x32xbf16>
    %cst_25 = arith.constant dense<0.000000e+00> : vector<8x32xf32>
    %48 = tpu.matmul %46, %47, %cst_25 {dimension_numbers = #tpu.dot_dimension_numbers<[1], [0], [0], [1], [0, 0, 1, 1], [], []>} : vector<8x512xbf16>, vector<512x32xbf16>, vector<8x32xf32> -> vector<8x32xf32>
    %c0_26 = arith.constant 0 : index
    %c0_27 = arith.constant 0 : index
    %49 = vector.load %arg8[%c0_26, %c0_27] : memref<1x32xf32, #tpu.memory_space<vmem>>, vector<1x32xf32>
    %50 = vector.broadcast %49 : vector<1x32xf32> to vector<8x32xf32>
    %51 = arith.addf %48, %50 : vector<8x32xf32>
    %52 = vector.extract_strided_slice %51 {offsets = [0, 0], sizes = [8, 16], strides = [1, 1]} : vector<8x32xf32> to vector<8x16xf32>
    %53 = vector.extract_strided_slice %51 {offsets = [0, 16], sizes = [8, 16], strides = [1, 1]} : vector<8x32xf32> to vector<8x16xf32>
    %c0_28 = arith.constant 0 : index
    %c0_29 = arith.constant 0 : index
    %54 = vector.load %arg9[%c0_28, %c0_29] : memref<8x16xf32, #tpu.memory_space<vmem>>, vector<8x16xf32>
    %cst_30 = arith.constant 5.000000e-01 : f32
    %55 = vector.broadcast %cst_30 : f32 to vector<8x16xf32>
    %56 = arith.mulf %53, %55 : vector<8x16xf32>
    %57 = math.exp %56 : vector<8x16xf32>
    %58 = arith.mulf %54, %57 : vector<8x16xf32>
    %59 = arith.addf %58, %52 : vector<8x16xf32>
    %c0_31 = arith.constant 0 : index
    %c0_32 = arith.constant 0 : index
    %60 = vector.load %arg10[%c0_31, %c0_32] : memref<8x16xf32, #tpu.memory_space<vmem>>, vector<8x16xf32>
    tpu.vector_store %arg10[%c0_31, %c0_32], %59 {strides = array<i32>} : memref<8x16xf32, #tpu.memory_space<vmem>>, vector<8x16xf32>,
    return
  }
}

</mosaic_0001>

<llo_original>
// kernel: encoder_forward.1
$region0: #{encoder_forward.1}
  #allocation0 [shape = 'u32[]', space=smem, size = 0x4, offset = 0x4, fixed_abs, tag = 'smem constant byte address 0x4 - core index']
  #allocation1 [shape = 'u32[144,128]{1,0:T(1,128)}', space=vmem, size = 0x12000, scoped, tag = 'internal scratch']
  %s0 = inlined_call_operand.vmem [shape: bf16[8,256], index: 0, kind: input, shape index: {}]
  %s1 = inlined_call_operand.vmem [shape: bf16[256,512], index: 1, kind: input, shape index: {}]
  %s2 = inlined_call_operand.vmem [shape: f32[1,512], index: 2, kind: input, shape index: {}]
  %s3 = inlined_call_operand.hbm [shape: bf16[512,512], index: 3, kind: input, shape index: {}]
  %s4 = inlined_call_operand.vmem [shape: f32[1,512], index: 4, kind: input, shape index: {}]
  %s5 = inlined_call_operand.vmem [shape: f32[1,512], index: 5, kind: input, shape index: {}]
  %s6 = inlined_call_operand.vmem [shape: f32[1,512], index: 6, kind: input, shape index: {}]
  %s7 = inlined_call_operand.vmem [shape: bf16[512,32], index: 7, kind: input, shape index: {}]
  %s8 = inlined_call_operand.vmem [shape: f32[1,32], index: 8, kind: input, shape index: {}]
  %s9 = inlined_call_operand.vmem [shape: f32[8,16], index: 9, kind: input, shape index: {}]
  %s10 = inlined_call_operand.hbm [shape: f32[8,16], index: 10, kind: output, shape index: {}]
  %s11 = sld [smem:[#allocation0]]
  $region54: #{encoder_forward.1} parent=0
    _
  %s13 = ssub.s32 1, %s11
  %s14 = scalar_select 0, %s13, %s11
  $region1: #{encoder_forward.1} parent=0
    #allocation2 [shape = 'u8[524288]{0}', space=vmem, size = 0x80000, scoped, tag = 'input window, operand 3, single buffered']
    #allocation3 [shape = 's32[1]{0}', space=sflag, size = 0x4, scoped, tag = 'scoped memory for encoder_forward.1']
    #allocation4 [shape = 's32[1]{0}', space=sflag, size = 0x4, scoped, tag = 'scoped memory for encoder_forward.1']
    #allocation5 [shape = 'u8[4096]{0}', space=vmem, size = 0x1000, scoped, tag = 'output window, operand 0, single buffered']
    %15 = vsyncpa [#allocation3], 0
    %16 = vsyncpa [#allocation4], 0
    // Predicated region
    $region2: #{encoder_forward.1} parent=1 // pred_check
      _
    $region3: #{encoder_forward.1} parent=1 // pred_check_branch
      %18 = sbr.rel (0) target = $region5
    $region4: #{encoder_forward.1} parent=1 // pred_region
      _
    $region5: #{encoder_forward.1} parent=1 // pred_fallthru
      _
    // Predicated region
    $region6: #{encoder_forward.1} parent=1 // pred_check
      _
    $region7: #{encoder_forward.1} parent=1 // pred_check_branch
      %20 = sbr.rel (0) target = $region9
    $region8: #{encoder_forward.1} parent=1 // pred_region
      _
    $region9: #{encoder_forward.1} parent=1 // pred_fallthru
      _
    // Predicated region
    $region10: #{encoder_forward.1} parent=1 // pred_check
      _
    $region11: #{encoder_forward.1} parent=1 // pred_check_branch
      %22 = sbr.rel (0) target = $region13
    $region12: #{encoder_forward.1} parent=1 // pred_region
      _
    $region13: #{encoder_forward.1} parent=1 // pred_fallthru
      _
    // Predicated region
    $region14: #{encoder_forward.1} parent=1 // pred_check
      _
    $region15: #{encoder_forward.1} parent=1 // pred_check_branch
      %24 = sbr.rel (0) target = $region17
    $region16: #{encoder_forward.1} parent=1 // pred_region
      %s26 = ssub.s32 16384, 16384
      %27 = vsyncadd [#allocation3], %s26
      %s28 = sshll.u32 [#allocation2], 4
      %s29 = int_to_ptr.vmem [resolvable:$true] %s28
      %34 = dma.hbm_to_vmem [thread:$0]  %s3, 16384, %s29, [#allocation3], 256, 256, 16
    $region17: #{encoder_forward.1} parent=1 // pred_fallthru
      _
    // Predicated region
    $region18: #{encoder_forward.1} parent=1 // pred_check
      _
    $region19: #{encoder_forward.1} parent=1 // pred_check_branch
      %36 = sbr.rel (0) target = $region21
    $region20: #{encoder_forward.1} parent=1 // pred_region
      _
    $region21: #{encoder_forward.1} parent=1 // pred_fallthru
      _
    // Predicated region
    $region22: #{encoder_forward.1} parent=1 // pred_check
      _
    $region23: #{encoder_forward.1} parent=1 // pred_check_branch
      %38 = sbr.rel (0) target = $region25
    $region24: #{encoder_forward.1} parent=1 // pred_region
      _
    $region25: #{encoder_forward.1} parent=1 // pred_fallthru
      _
    // Predicated region
    $region26: #{encoder_forward.1} parent=1 // pred_check
      _
    $region27: #{encoder_forward.1} parent=1 // pred_check_branch
      %40 = sbr.rel (0) target = $region29
    $region28: #{encoder_forward.1} parent=1 // pred_region
      _
    $region29: #{encoder_forward.1} parent=1 // pred_fallthru
      _
    // Predicated region
    $region30: #{encoder_forward.1} parent=1 // pred_check
      _
    $region31: #{encoder_forward.1} parent=1 // pred_check_branch
      %42 = sbr.rel (0) target = $region33
    $region32: #{encoder_forward.1} parent=1 // pred_region
      _
    $region33: #{encoder_forward.1} parent=1 // pred_fallthru
      _
    // Predicated region
    $region34: #{encoder_forward.1} parent=1 // pred_check
      _
    $region35: #{encoder_forward.1} parent=1 // pred_check_branch
      %44 = sbr.rel (0) target = $region37
    $region36: #{encoder_forward.1} parent=1 // pred_region
      _
    $region37: #{encoder_forward.1} parent=1 // pred_fallthru
      _
    // Predicated region
    $region38: #{encoder_forward.1} parent=1 // pred_check
      _
    $region39: #{encoder_forward.1} parent=1 // pred_check_branch
      %46 = sbr.rel (0) target = $region41
    $region40: #{encoder_forward.1} parent=1 // pred_region
      _
    $region41: #{encoder_forward.1} parent=1 // pred_fallthru
      _
    // Predicated region
    $region42: #{encoder_forward.1} parent=1 // pred_check
      _
    $region43: #{encoder_forward.1} parent=1 // pred_check_branch
      %48 = sbr.rel (0) target = $region45
    $region44: #{encoder_forward.1} parent=1 // pred_region
      %49 = dma.done [#allocation3], 16384
    $region45: #{encoder_forward.1} parent=1 // pred_fallthru
      _
    %v51 = vld [vmem:[%s0] sm:$0xff]
    %v52 = vld [vmem:[%s1] sm:$0xff]
    %v53 = vld [vmem:[%s1 + $0x8] sm:$0xff]
    %v54 = vld [vmem:[%s1 + $0x10] sm:$0xff]
    %v55 = vld [vmem:[%s1 + $0x18] sm:$0xff]
    %v56 = vld [vmem:[%s1 + $0x20] sm:$0xff]
    %v57 = vld [vmem:[%s1 + $0x28] sm:$0xff]
    %v58 = vld [vmem:[%s1 + $0x30] sm:$0xff]
    %v59 = vld [vmem:[%s1 + $0x38] sm:$0xff]
    %v60 = vld [vmem:[%s1 + $0x40] sm:$0xff]
    %v61 = vld [vmem:[%s1 + $0x48] sm:$0xff]
    %v62 = vld [vmem:[%s1 + $0x50] sm:$0xff]
    %v63 = vld [vmem:[%s1 + $0x58] sm:$0xff]
    %v64 = vld [vmem:[%s1 + $0x60] sm:$0xff]
    %v65 = vld [vmem:[%s1 + $0x68] sm:$0xff]
    %v66 = vld [vmem:[%s1 + $0x70] sm:$0xff]
    %v67 = vld [vmem:[%s1 + $0x78] sm:$0xff]
    %v68 = vld [vmem:[%s1 + $0x80] sm:$0xff]
    %v69 = vld [vmem:[%s1 + $0x88] sm:$0xff]
    %v70 = vld [vmem:[%s1 + $0x90] sm:$0xff]
    %v71 = vld [vmem:[%s1 + $0x98] sm:$0xff]
    %v72 = vld [vmem:[%s1 + $0xa0] sm:$0xff]
    %v73 = vld [vmem:[%s1 + $0xa8] sm:$0xff]
    %v74 = vld [vmem:[%s1 + $0xb0] sm:$0xff]
    %v75 = vld [vmem:[%s1 + $0xb8] sm:$0xff]
    %v76 = vld [vmem:[%s1 + $0xc0] sm:$0xff]
    %v77 = vld [vmem:[%s1 + $0xc8] sm:$0xff]
    %v78 = vld [vmem:[%s1 + $0xd0] sm:$0xff]
    %v79 = vld [vmem:[%s1 + $0xd8] sm:$0xff]
    %v80 = vld [vmem:[%s1 + $0xe0] sm:$0xff]
    %v81 = vld [vmem:[%s1 + $0xe8] sm:$0xff]
    %v82 = vld [vmem:[%s1 + $0xf0] sm:$0xff]
    %v83 = vld [vmem:[%s1 + $0xf8] sm:$0xff]
    %v84 = vld [vmem:[%s1 + $0x100] sm:$0xff]
    %v85 = vld [vmem:[%s1 + $0x108] sm:$0xff]
    %v86 = vld [vmem:[%s1 + $0x110] sm:$0xff]
    %v87 = vld [vmem:[%s1 + $0x118] sm:$0xff]
    %v88 = vld [vmem:[%s1 + $0x120] sm:$0xff]
    %v89 = vld [vmem:[%s1 + $0x128] sm:$0xff]
    %v90 = vld [vmem:[%s1 + $0x130] sm:$0xff]
    %v91 = vld [vmem:[%s1 + $0x138] sm:$0xff]
    %v92 = vld [vmem:[%s1 + $0x140] sm:$0xff]
    %v93 = vld [vmem:[%s1 + $0x148] sm:$0xff]
    %v94 = vld [vmem:[%s1 + $0x150] sm:$0xff]
    %v95 = vld [vmem:[%s1 + $0x158] sm:$0xff]
    %v96 = vld [vmem:[%s1 + $0x160] sm:$0xff]
    %v97 = vld [vmem:[%s1 + $0x168] sm:$0xff]
    %v98 = vld [vmem:[%s1 + $0x170] sm:$0xff]
    %v99 = vld [vmem:[%s1 + $0x178] sm:$0xff]
    %v100 = vld [vmem:[%s1 + $0x180] sm:$0xff]
    %v101 = vld [vmem:[%s1 + $0x188] sm:$0xff]
    %v102 = vld [vmem:[%s1 + $0x190] sm:$0xff]
    %v103 = vld [vmem:[%s1 + $0x198] sm:$0xff]
    %v104 = vld [vmem:[%s1 + $0x1a0] sm:$0xff]
    %v105 = vld [vmem:[%s1 + $0x1a8] sm:$0xff]
    %v106 = vld [vmem:[%s1 + $0x1b0] sm:$0xff]
    %v107 = vld [vmem:[%s1 + $0x1b8] sm:$0xff]
    %v108 = vld [vmem:[%s1 + $0x1c0] sm:$0xff]
    %v109 = vld [vmem:[%s1 + $0x1c8] sm:$0xff]
    %v110 = vld [vmem:[%s1 + $0x1d0] sm:$0xff]
    %v111 = vld [vmem:[%s1 + $0x1d8] sm:$0xff]
    %v112 = vld [vmem:[%s1 + $0x1e0] sm:$0xff]
    %v113 = vld [vmem:[%s1 + $0x1e8] sm:$0xff]
    %v114 = vld [vmem:[%s1 + $0x1f0] sm:$0xff]
    %v115 = vld [vmem:[%s1 + $0x1f8] sm:$0xff]
    %v116 = vld [vmem:[%s2] sm:$0xf]
    %v118 = vlaneseq
    %v119 = vshrl.u32 %v118, 7
    %v120 = vsub.s32 0, %v119
    %v121 = vrot.slane %v116, %v120
    %v122 = vlaneseq
    %v123 = vshrl.u32 %v122, 7
    %v124 = vsub.s32 1, %v123
    %v125 = vrot.slane %v116, %v124
    %v126 = vlaneseq
    %v127 = vshrl.u32 %v126, 7
    %v128 = vsub.s32 2, %v127
    %v129 = vrot.slane %v116, %v128
    %v130 = vlaneseq
    %v131 = vshrl.u32 %v130, 7
    %v132 = vsub.s32 3, %v131
    %v133 = vrot.slane %v116, %v132
    %v139 = vunpack.c.l.b16 %v51
    %v140 = vunpack.c.h.b16 %v51
    %v141 = vpack.c.b16 %v139, %v139
    %v142 = vpack.c.b16 %v140, %v140
    %v209 = vunpack.c.l.b16 %v52
    %v210 = vunpack.c.h.b16 %v52
    %v211 = vunpack.c.l.b16 %v53
    %v212 = vunpack.c.h.b16 %v53
    %v213 = vunpack.c.l.b16 %v54
    %v214 = vunpack.c.h.b16 %v54
    %v215 = vunpack.c.l.b16 %v55
    %v216 = vunpack.c.h.b16 %v55
    %v217 = vunpack.c.l.b16 %v56
    %v218 = vunpack.c.h.b16 %v56
    %v219 = vunpack.c.l.b16 %v57
    %v220 = vunpack.c.h.b16 %v57
    %v221 = vunpack.c.l.b16 %v58
    %v222 = vunpack.c.h.b16 %v58
    %v223 = vunpack.c.l.b16 %v59
    %v224 = vunpack.c.h.b16 %v59
    %v225 = vunpack.c.l.b16 %v60
    %v226 = vunpack.c.h.b16 %v60
    %v227 = vunpack.c.l.b16 %v61
    %v228 = vunpack.c.h.b16 %v61
    %v229 = vunpack.c.l.b16 %v62
    %v230 = vunpack.c.h.b16 %v62
    %v231 = vunpack.c.l.b16 %v63
    %v232 = vunpack.c.h.b16 %v63
    %v233 = vunpack.c.l.b16 %v64
    %v234 = vunpack.c.h.b16 %v64
    %v235 = vunpack.c.l.b16 %v65
    %v236 = vunpack.c.h.b16 %v65
    %v237 = vunpack.c.l.b16 %v66
    %v238 = vunpack.c.h.b16 %v66
    %v239 = vunpack.c.l.b16 %v67
    %v240 = vunpack.c.h.b16 %v67
    %v241 = vunpack.c.l.b16 %v68
    %v242 = vunpack.c.h.b16 %v68
    %v243 = vunpack.c.l.b16 %v69
    %v244 = vunpack.c.h.b16 %v69
    %v245 = vunpack.c.l.b16 %v70
    %v246 = vunpack.c.h.b16 %v70
    %v247 = vunpack.c.l.b16 %v71
    %v248 = vunpack.c.h.b16 %v71
    %v249 = vunpack.c.l.b16 %v72
    %v250 = vunpack.c.h.b16 %v72
    %v251 = vunpack.c.l.b16 %v73
    %v252 = vunpack.c.h.b16 %v73
    %v253 = vunpack.c.l.b16 %v74
    %v254 = vunpack.c.h.b16 %v74
    %v255 = vunpack.c.l.b16 %v75
    %v256 = vunpack.c.h.b16 %v75
    %v257 = vunpack.c.l.b16 %v76
    %v258 = vunpack.c.h.b16 %v76
    %v259 = vunpack.c.l.b16 %v77
    %v260 = vunpack.c.h.b16 %v77
    %v261 = vunpack.c.l.b16 %v78
    %v262 = vunpack.c.h.b16 %v78
    %v263 = vunpack.c.l.b16 %v79
    %v264 = vunpack.c.h.b16 %v79
    %v265 = vunpack.c.l.b16 %v80
    %v266 = vunpack.c.h.b16 %v80
    %v267 = vunpack.c.l.b16 %v81
    %v268 = vunpack.c.h.b16 %v81
    %v269 = vunpack.c.l.b16 %v82
    %v270 = vunpack.c.h.b16 %v82
    %v271 = vunpack.c.l.b16 %v83
    %v272 = vunpack.c.h.b16 %v83
    %v273 = vunpack.c.l.b16 %v84
    %v274 = vunpack.c.h.b16 %v84
    %v275 = vunpack.c.l.b16 %v85
    %v276 = vunpack.c.h.b16 %v85
    %v277 = vunpack.c.l.b16 %v86
    %v278 = vunpack.c.h.b16 %v86
    %v279 = vunpack.c.l.b16 %v87
    %v280 = vunpack.c.h.b16 %v87
    %v281 = vunpack.c.l.b16 %v88
    %v282 = vunpack.c.h.b16 %v88
    %v283 = vunpack.c.l.b16 %v89
    %v284 = vunpack.c.h.b16 %v89
    %v285 = vunpack.c.l.b16 %v90
    %v286 = vunpack.c.h.b16 %v90
    %v287 = vunpack.c.l.b16 %v91
    %v288 = vunpack.c.h.b16 %v91
    %v289 = vunpack.c.l.b16 %v92
    %v290 = vunpack.c.h.b16 %v92
    %v291 = vunpack.c.l.b16 %v93
    %v292 = vunpack.c.h.b16 %v93
    %v293 = vunpack.c.l.b16 %v94
    %v294 = vunpack.c.h.b16 %v94
    %v295 = vunpack.c.l.b16 %v95
    %v296 = vunpack.c.h.b16 %v95
    %v297 = vunpack.c.l.b16 %v96
    %v298 = vunpack.c.h.b16 %v96
    %v299 = vunpack.c.l.b16 %v97
    %v300 = vunpack.c.h.b16 %v97
    %v301 = vunpack.c.l.b16 %v98
    %v302 = vunpack.c.h.b16 %v98
    %v303 = vunpack.c.l.b16 %v99
    %v304 = vunpack.c.h.b16 %v99
    %v305 = vunpack.c.l.b16 %v100
    %v306 = vunpack.c.h.b16 %v100
    %v307 = vunpack.c.l.b16 %v101
    %v308 = vunpack.c.h.b16 %v101
    %v309 = vunpack.c.l.b16 %v102
    %v310 = vunpack.c.h.b16 %v102
    %v311 = vunpack.c.l.b16 %v103
    %v312 = vunpack.c.h.b16 %v103
    %v313 = vunpack.c.l.b16 %v104
    %v314 = vunpack.c.h.b16 %v104
    %v315 = vunpack.c.l.b16 %v105
    %v316 = vunpack.c.h.b16 %v105
    %v317 = vunpack.c.l.b16 %v106
    %v318 = vunpack.c.h.b16 %v106
    %v319 = vunpack.c.l.b16 %v107
    %v320 = vunpack.c.h.b16 %v107
    %v321 = vunpack.c.l.b16 %v108
    %v322 = vunpack.c.h.b16 %v108
    %v323 = vunpack.c.l.b16 %v109
    %v324 = vunpack.c.h.b16 %v109
    %v325 = vunpack.c.l.b16 %v110
    %v326 = vunpack.c.h.b16 %v110
    %v327 = vunpack.c.l.b16 %v111
    %v328 = vunpack.c.h.b16 %v111
    %v329 = vunpack.c.l.b16 %v112
    %v330 = vunpack.c.h.b16 %v112
    %v331 = vunpack.c.l.b16 %v113
    %v332 = vunpack.c.h.b16 %v113
    %v333 = vunpack.c.l.b16 %v114
    %v334 = vunpack.c.h.b16 %v114
    %v335 = vunpack.c.l.b16 %v115
    %v336 = vunpack.c.h.b16 %v115
    %v337 = vpack.c.b16 %v213, %v209
    %v338 = vpack.c.b16 %v214, %v210
    %v339 = vpack.c.b16 %v215, %v211
    %v340 = vpack.c.b16 %v216, %v212
    %v341 = vpack.c.b16 %v221, %v217
    %v342 = vpack.c.b16 %v222, %v218
    %v343 = vpack.c.b16 %v223, %v219
    %v344 = vpack.c.b16 %v224, %v220
    %v345 = vpack.c.b16 %v229, %v225
    %v346 = vpack.c.b16 %v230, %v226
    %v347 = vpack.c.b16 %v231, %v227
    %v348 = vpack.c.b16 %v232, %v228
    %v349 = vpack.c.b16 %v237, %v233
    %v350 = vpack.c.b16 %v238, %v234
    %v351 = vpack.c.b16 %v239, %v235
    %v352 = vpack.c.b16 %v240, %v236
    %v353 = vpack.c.b16 %v245, %v241
    %v354 = vpack.c.b16 %v246, %v242
    %v355 = vpack.c.b16 %v247, %v243
    %v356 = vpack.c.b16 %v248, %v244
    %v357 = vpack.c.b16 %v253, %v249
    %v358 = vpack.c.b16 %v254, %v250
    %v359 = vpack.c.b16 %v255, %v251
    %v360 = vpack.c.b16 %v256, %v252
    %v361 = vpack.c.b16 %v261, %v257
    %v362 = vpack.c.b16 %v262, %v258
    %v363 = vpack.c.b16 %v263, %v259
    %v364 = vpack.c.b16 %v264, %v260
    %v365 = vpack.c.b16 %v269, %v265
    %v366 = vpack.c.b16 %v270, %v266
    %v367 = vpack.c.b16 %v271, %v267
    %v368 = vpack.c.b16 %v272, %v268
    %v369 = vpack.c.b16 %v277, %v273
    %v370 = vpack.c.b16 %v278, %v274
    %v371 = vpack.c.b16 %v279, %v275
    %v372 = vpack.c.b16 %v280, %v276
    %v373 = vpack.c.b16 %v285, %v281
    %v374 = vpack.c.b16 %v286, %v282
    %v375 = vpack.c.b16 %v287, %v283
    %v376 = vpack.c.b16 %v288, %v284
    %v377 = vpack.c.b16 %v293, %v289
    %v378 = vpack.c.b16 %v294, %v290
    %v379 = vpack.c.b16 %v295, %v291
    %v380 = vpack.c.b16 %v296, %v292
    %v381 = vpack.c.b16 %v301, %v297
    %v382 = vpack.c.b16 %v302, %v298
    %v383 = vpack.c.b16 %v303, %v299
    %v384 = vpack.c.b16 %v304, %v300
    %v385 = vpack.c.b16 %v309, %v305
    %v386 = vpack.c.b16 %v310, %v306
    %v387 = vpack.c.b16 %v311, %v307
    %v388 = vpack.c.b16 %v312, %v308
    %v389 = vpack.c.b16 %v317, %v313
    %v390 = vpack.c.b16 %v318, %v314
    %v391 = vpack.c.b16 %v319, %v315
    %v392 = vpack.c.b16 %v320, %v316
    %v393 = vpack.c.b16 %v325, %v321
    %v394 = vpack.c.b16 %v326, %v322
    %v395 = vpack.c.b16 %v327, %v323
    %v396 = vpack.c.b16 %v328, %v324
    %v397 = vpack.c.b16 %v333, %v329
    %v398 = vpack.c.b16 %v334, %v330
    %v399 = vpack.c.b16 %v335, %v331
    %v400 = vpack.c.b16 %v336, %v332
    %465 = vmatprep.subr.bf16.mxu0 %v338
    %466 = vmatpush1.bf16.msra.mxu0 %v337
    %467 = vmatprep.subr.bf16.mxu0 %v342
    %468 = vmatpush1.bf16.msra.mxu0 %v341
    %469 = vmatprep.subr.bf16.mxu0 %v346
    %470 = vmatpush1.bf16.msra.mxu0 %v345
    %471 = vmatprep.subr.bf16.mxu0 %v350
    %472 = vmatpush1.bf16.msra.mxu0 %v349
    %473 = vmatprep.subr.bf16.mxu0 %v354
    %474 = vmatpush1.bf16.msra.mxu0 %v353
    %475 = vmatprep.subr.bf16.mxu0 %v358
    %476 = vmatpush1.bf16.msra.mxu0 %v357
    %477 = vmatprep.subr.bf16.mxu0 %v362
    %478 = vmatpush1.bf16.msra.mxu0 %v361
    %479 = vmatprep.subr.bf16.mxu0 %v366
    %480 = vmatpush1.bf16.msra.mxu0 %v365
    %481 = vmatprep.subr.bf16.mxu0 %v370
    %482 = vmatpush1.bf16.msra.mxu0 %v369
    %483 = vmatprep.subr.bf16.mxu0 %v374
    %484 = vmatpush1.bf16.msra.mxu0 %v373
    %485 = vmatprep.subr.bf16.mxu0 %v378
    %486 = vmatpush1.bf16.msra.mxu0 %v377
    %487 = vmatprep.subr.bf16.mxu0 %v382
    %488 = vmatpush1.bf16.msra.mxu0 %v381
    %489 = vmatprep.subr.bf16.mxu0 %v386
    %490 = vmatpush1.bf16.msra.mxu0 %v385
    %491 = vmatprep.subr.bf16.mxu0 %v390
    %492 = vmatpush1.bf16.msra.mxu0 %v389
    %493 = vmatprep.subr.bf16.mxu0 %v394
    %494 = vmatpush1.bf16.msra.mxu0 %v393
    %495 = vmatprep.subr.bf16.mxu0 %v398
    %496 = vmatpush1.bf16.msra.mxu0 %v397
    %497 = vmatprep.mubr.bf16.mxu0 %v142
    %498 = vmatmul.mubr.bf16.gmra.mrb[0].mxu0 %v141
    %v499 = vpop.f32.mrb[0].mxu0
    %v500 = vadd.f32 %v121, %v499
    %v501 = vpop.f32.mrb[0].mxu0
    %v502 = vadd.f32 %v125, %v501
    %v503 = vpop.f32.mrb[0].mxu0
    %v504 = vpop.f32.mrb[0].mxu0
    %505 = vdwg.mxu0
    %506 = vmatprep.subr.bf16.mxu0 %v340
    %507 = vmatpush1.bf16.msra.mxu0 %v339
    %508 = vmatprep.subr.bf16.mxu0 %v344
    %509 = vmatpush1.bf16.msra.mxu0 %v343
    %510 = vmatprep.subr.bf16.mxu0 %v348
    %511 = vmatpush1.bf16.msra.mxu0 %v347
    %512 = vmatprep.subr.bf16.mxu0 %v352
    %513 = vmatpush1.bf16.msra.mxu0 %v351
    %514 = vmatprep.subr.bf16.mxu0 %v356
    %515 = vmatpush1.bf16.msra.mxu0 %v355
    %516 = vmatprep.subr.bf16.mxu0 %v360
    %517 = vmatpush1.bf16.msra.mxu0 %v359
    %518 = vmatprep.subr.bf16.mxu0 %v364
    %519 = vmatpush1.bf16.msra.mxu0 %v363
    %520 = vmatprep.subr.bf16.mxu0 %v368
    %521 = vmatpush1.bf16.msra.mxu0 %v367
    %522 = vmatprep.subr.bf16.mxu0 %v372
    %523 = vmatpush1.bf16.msra.mxu0 %v371
    %524 = vmatprep.subr.bf16.mxu0 %v376
    %525 = vmatpush1.bf16.msra.mxu0 %v375
    %526 = vmatprep.subr.bf16.mxu0 %v380
    %527 = vmatpush1.bf16.msra.mxu0 %v379
    %528 = vmatprep.subr.bf16.mxu0 %v384
    %529 = vmatpush1.bf16.msra.mxu0 %v383
    %530 = vmatprep.subr.bf16.mxu0 %v388
    %531 = vmatpush1.bf16.msra.mxu0 %v387
    %532 = vmatprep.subr.bf16.mxu0 %v392
    %533 = vmatpush1.bf16.msra.mxu0 %v391
    %534 = vmatprep.subr.bf16.mxu0 %v396
    %535 = vmatpush1.bf16.msra.mxu0 %v395
    %536 = vmatprep.subr.bf16.mxu0 %v400
    %537 = vmatpush1.bf16.msra.mxu0 %v399
    %538 = vmatprep.mubr.bf16.mxu0 %v142
    %539 = vmatmul.mubr.bf16.gmra.mrb[0].mxu0 %v141
    %v540 = vpop.f32.mrb[0].mxu0
    %v541 = vadd.f32 %v129, %v540
    %v542 = vpop.f32.mrb[0].mxu0
    %v543 = vadd.f32 %v133, %v542
    %v544 = vpop.f32.mrb[0].mxu0
    %v545 = vpop.f32.mrb[0].mxu0
    %546 = vdwg.mxu0
    %vm547 = vcmp.gt.f32.partialorder %v500, 0.0
    %vm548 = vcmp.gt.f32.partialorder %v502, 0.0
    %vm549 = vcmp.gt.f32.partialorder %v541, 0.0
    %vm550 = vcmp.gt.f32.partialorder %v543, 0.0
    %v551 = vmul.f32 %v500, 0.2
    %v552 = vmul.f32 %v502, 0.2
    %v553 = vmul.f32 %v541, 0.2
    %v554 = vmul.f32 %v543, 0.2
    %v555 = vsel %vm547, %v500, %v551
    %v556 = vsel %vm548, %v502, %v552
    %v557 = vsel %vm549, %v541, %v553
    %v558 = vsel %vm550, %v543, %v554
    %v559 = vpack.c.bf16 %v555, %v555
    %v560 = vpack.c.bf16 %v556, %v556
    %v561 = vpack.c.bf16 %v557, %v557
    %v562 = vpack.c.bf16 %v558, %v558
    %v563 = vld [vmem:[#allocation2] sm:$0xff]
    %v564 = vld [vmem:[#allocation2 + $0x8] sm:$0xff]
    %v565 = vld [vmem:[#allocation2 + $0x10] sm:$0xff]
    %v566 = vld [vmem:[#allocation2 + $0x18] sm:$0xff]
    %v567 = vld [vmem:[#allocation2 + $0x20] sm:$0xff]
    %v568 = vld [vmem:[#allocation2 + $0x28] sm:$0xff]
    %v569 = vld [vmem:[#allocation2 + $0x30] sm:$0xff]
    %v570 = vld [vmem:[#allocation2 + $0x38] sm:$0xff]
    %v571 = vld [vmem:[#allocation2 + $0x40] sm:$0xff]
    %v572 = vld [vmem:[#allocation2 + $0x48] sm:$0xff]
    %v573 = vld [vmem:[#allocation2 + $0x50] sm:$0xff]
    %v574 = vld [vmem:[#allocation2 + $0x58] sm:$0xff]
    %v575 = vld [vmem:[#allocation2 + $0x60] sm:$0xff]
    %v576 = vld [vmem:[#allocation2 + $0x68] sm:$0xff]
    %v577 = vld [vmem:[#allocation2 + $0x70] sm:$0xff]
    %v578 = vld [vmem:[#allocation2 + $0x78] sm:$0xff]
    %v579 = vld [vmem:[#allocation2 + $0x80] sm:$0xff]
    %v580 = vld [vmem:[#allocation2 + $0x88] sm:$0xff]
    %v581 = vld [vmem:[#allocation2 + $0x90] sm:$0xff]
    %v582 = vld [vmem:[#allocation2 + $0x98] sm:$0xff]
    %v583 = vld [vmem:[#allocation2 + $0xa0] sm:$0xff]
    %v584 = vld [vmem:[#allocation2 + $0xa8] sm:$0xff]
    %v585 = vld [vmem:[#allocation2 + $0xb0] sm:$0xff]
    %v586 = vld [vmem:[#allocation2 + $0xb8] sm:$0xff]
    %v587 = vld [vmem:[#allocation2 + $0xc0] sm:$0xff]
    %v588 = vld [vmem:[#allocation2 + $0xc8] sm:$0xff]
    %v589 = vld [vmem:[#allocation2 + $0xd0] sm:$0xff]
    %v590 = vld [vmem:[#allocation2 + $0xd8] sm:$0xff]
    %v591 = vld [vmem:[#allocation2 + $0xe0] sm:$0xff]
    %v592 = vld [vmem:[#allocation2 + $0xe8] sm:$0xff]
    %v593 = vld [vmem:[#allocation2 + $0xf0] sm:$0xff]
    %v594 = vld [vmem:[#allocation2 + $0xf8] sm:$0xff]
    %v595 = vld [vmem:[#allocation2 + $0x100] sm:$0xff]
    %v596 = vld [vmem:[#allocation2 + $0x108] sm:$0xff]
    %v597 = vld [vmem:[#allocation2 + $0x110] sm:$0xff]
    %v598 = vld [vmem:[#allocation2 + $0x118] sm:$0xff]
    %v599 = vld [vmem:[#allocation2 + $0x120] sm:$0xff]
    %v600 = vld [vmem:[#allocation2 + $0x128] sm:$0xff]
    %v601 = vld [vmem:[#allocation2 + $0x130] sm:$0xff]
    %v602 = vld [vmem:[#allocation2 + $0x138] sm:$0xff]
    %v603 = vld [vmem:[#allocation2 + $0x140] sm:$0xff]
    %v604 = vld [vmem:[#allocation2 + $0x148] sm:$0xff]
    %v605 = vld [vmem:[#allocation2 + $0x150] sm:$0xff]
    %v606 = vld [vmem:[#allocation2 + $0x158] sm:$0xff]
    %v607 = vld [vmem:[#allocation2 + $0x160] sm:$0xff]
    %v608 = vld [vmem:[#allocation2 + $0x168] sm:$0xff]
    %v609 = vld [vmem:[#allocation2 + $0x170] sm:$0xff]
    %v610 = vld [vmem:[#allocation2 + $0x178] sm:$0xff]
    %v611 = vld [vmem:[#allocation2 + $0x180] sm:$0xff]
    %v612 = vld [vmem:[#allocation2 + $0x188] sm:$0xff]
    %v613 = vld [vmem:[#allocation2 + $0x190] sm:$0xff]
    %v614 = vld [vmem:[#allocation2 + $0x198] sm:$0xff]
    %v615 = vld [vmem:[#allocation2 + $0x1a0] sm:$0xff]
    %v616 = vld [vmem:[#allocation2 + $0x1a8] sm:$0xff]
    %v617 = vld [vmem:[#allocation2 + $0x1b0] sm:$0xff]
    %v618 = vld [vmem:[#allocation2 + $0x1b8] sm:$0xff]
    %v619 = vld [vmem:[#allocation2 + $0x1c0] sm:$0xff]
    %v620 = vld [vmem:[#allocation2 + $0x1c8] sm:$0xff]
    %v621 = vld [vmem:[#allocation2 + $0x1d0] sm:$0xff]
    %v622 = vld [vmem:[#allocation2 + $0x1d8] sm:$0xff]
    %v623 = vld [vmem:[#allocation2 + $0x1e0] sm:$0xff]
    %v624 = vld [vmem:[#allocation2 + $0x1e8] sm:$0xff]
    %v625 = vld [vmem:[#allocation2 + $0x1f0] sm:$0xff]
    %v626 = vld [vmem:[#allocation2 + $0x1f8] sm:$0xff]
    %v627 = vld [vmem:[#allocation2 + $0x200] sm:$0xff]
    %v628 = vld [vmem:[#allocation2 + $0x208] sm:$0xff]
    %v629 = vld [vmem:[#allocation2 + $0x210] sm:$0xff]
    %v630 = vld [vmem:[#allocation2 + $0x218] sm:$0xff]
    %v631 = vld [vmem:[#allocation2 + $0x220] sm:$0xff]
    %v632 = vld [vmem:[#allocation2 + $0x228] sm:$0xff]
    %v633 = vld [vmem:[#allocation2 + $0x230] sm:$0xff]
    %v634 = vld [vmem:[#allocation2 + $0x238] sm:$0xff]
    %v635 = vld [vmem:[#allocation2 + $0x240] sm:$0xff]
    %v636 = vld [vmem:[#allocation2 + $0x248] sm:$0xff]
    %v637 = vld [vmem:[#allocation2 + $0x250] sm:$0xff]
    %v638 = vld [vmem:[#allocation2 + $0x258] sm:$0xff]
    %v639 = vld [vmem:[#allocation2 + $0x260] sm:$0xff]
    %v640 = vld [vmem:[#allocation2 + $0x268] sm:$0xff]
    %v641 = vld [vmem:[#allocation2 + $0x270] sm:$0xff]
    %v642 = vld [vmem:[#allocation2 + $0x278] sm:$0xff]
    %v643 = vld [vmem:[#allocation2 + $0x280] sm:$0xff]
    %v644 = vld [vmem:[#allocation2 + $0x288] sm:$0xff]
    %v645 = vld [vmem:[#allocation2 + $0x290] sm:$0xff]
    %v646 = vld [vmem:[#allocation2 + $0x298] sm:$0xff]
    %v647 = vld [vmem:[#allocation2 + $0x2a0] sm:$0xff]
    %v648 = vld [vmem:[#allocation2 + $0x2a8] sm:$0xff]
    %v649 = vld [vmem:[#allocation2 + $0x2b0] sm:$0xff]
    %v650 = vld [vmem:[#allocation2 + $0x2b8] sm:$0xff]
    %v651 = vld [vmem:[#allocation2 + $0x2c0] sm:$0xff]
    %v652 = vld [vmem:[#allocation2 + $0x2c8] sm:$0xff]
    %v653 = vld [vmem:[#allocation2 + $0x2d0] sm:$0xff]
    %v654 = vld [vmem:[#allocation2 + $0x2d8] sm:$0xff]
    %v655 = vld [vmem:[#allocation2 + $0x2e0] sm:$0xff]
    %v656 = vld [vmem:[#allocation2 + $0x2e8] sm:$0xff]
    %v657 = vld [vmem:[#allocation2 + $0x2f0] sm:$0xff]
    %v658 = vld [vmem:[#allocation2 + $0x2f8] sm:$0xff]
    %v659 = vld [vmem:[#allocation2 + $0x300] sm:$0xff]
    %v660 = vld [vmem:[#allocation2 + $0x308] sm:$0xff]
    %v661 = vld [vmem:[#allocation2 + $0x310] sm:$0xff]
    %v662 = vld [vmem:[#allocation2 + $0x318] sm:$0xff]
    %v663 = vld [vmem:[#allocation2 + $0x320] sm:$0xff]
    %v664 = vld [vmem:[#allocation2 + $0x328] sm:$0xff]
    %v665 = vld [vmem:[#allocation2 + $0x330] sm:$0xff]
    %v666 = vld [vmem:[#allocation2 + $0x338] sm:$0xff]
    %v667 = vld [vmem:[#allocation2 + $0x340] sm:$0xff]
    %v668 = vld [vmem:[#allocation2 + $0x348] sm:$0xff]
    %v669 = vld [vmem:[#allocation2 + $0x350] sm:$0xff]
    %v670 = vld [vmem:[#allocation2 + $0x358] sm:$0xff]
    %v671 = vld [vmem:[#allocation2 + $0x360] sm:$0xff]
    %v672 = vld [vmem:[#allocation2 + $0x368] sm:$0xff]
    %v673 = vld [vmem:[#allocation2 + $0x370] sm:$0xff]
    %v674 = vld [vmem:[#allocation2 + $0x378] sm:$0xff]
    %v675 = vld [vmem:[#allocation2 + $0x380] sm:$0xff]
    %v676 = vld [vmem:[#allocation2 + $0x388] sm:$0xff]
    %v677 = vld [vmem:[#allocation2 + $0x390] sm:$0xff]
    %v678 = vld [vmem:[#allocation2 + $0x398] sm:$0xff]
    %v679 = vld [vmem:[#allocation2 + $0x3a0] sm:$0xff]
    %v680 = vld [vmem:[#allocation2 + $0x3a8] sm:$0xff]
    %v681 = vld [vmem:[#allocation2 + $0x3b0] sm:$0xff]
    %v682 = vld [vmem:[#allocation2 + $0x3b8] sm:$0xff]
    %v683 = vld [vmem:[#allocation2 + $0x3c0] sm:$0xff]
    %v684 = vld [vmem:[#allocation2 + $0x3c8] sm:$0xff]
    %v685 = vld [vmem:[#allocation2 + $0x3d0] sm:$0xff]
    %v686 = vld [vmem:[#allocation2 + $0x3d8] sm:$0xff]
    %v687 = vld [vmem:[#allocation2 + $0x3e0] sm:$0xff]
    %v688 = vld [vmem:[#allocation2 + $0x3e8] sm:$0xff]
    %v689 = vld [vmem:[#allocation2 + $0x3f0] sm:$0xff]
    %v690 = vld [vmem:[#allocation2 + $0x3f8] sm:$0xff]
    %v691 = vld [vmem:[%s4] sm:$0xf]
    %v693 = vlaneseq
    %v694 = vshrl.u32 %v693, 7
    %v695 = vsub.s32 0, %v694
    %v696 = vrot.slane %v691, %v695
    %v697 = vlaneseq
    %v698 = vshrl.u32 %v697, 7
    %v699 = vsub.s32 1, %v698
    %v700 = vrot.slane %v691, %v699
    %v701 = vlaneseq
    %v702 = vshrl.u32 %v701, 7
    %v703 = vsub.s32 2, %v702
    %v704 = vrot.slane %v691, %v703
    %v705 = vlaneseq
    %v706 = vshrl.u32 %v705, 7
    %v707 = vsub.s32 3, %v706
    %v708 = vrot.slane %v691, %v707
    %v841 = vunpack.c.l.b16 %v563
    %v842 = vunpack.c.h.b16 %v563
    %v843 = vunpack.c.l.b16 %v564
    %v844 = vunpack.c.h.b16 %v564
    %v845 = vunpack.c.l.b16 %v565
    %v846 = vunpack.c.h.b16 %v565
    %v847 = vunpack.c.l.b16 %v566
    %v848 = vunpack.c.h.b16 %v566
    %v849 = vunpack.c.l.b16 %v567
    %v850 = vunpack.c.h.b16 %v567
    %v851 = vunpack.c.l.b16 %v568
    %v852 = vunpack.c.h.b16 %v568
    %v853 = vunpack.c.l.b16 %v569
    %v854 = vunpack.c.h.b16 %v569
    %v855 = vunpack.c.l.b16 %v570
    %v856 = vunpack.c.h.b16 %v570
    %v857 = vunpack.c.l.b16 %v571
    %v858 = vunpack.c.h.b16 %v571
    %v859 = vunpack.c.l.b16 %v572
    %v860 = vunpack.c.h.b16 %v572
    %v861 = vunpack.c.l.b16 %v573
    %v862 = vunpack.c.h.b16 %v573
    %v863 = vunpack.c.l.b16 %v574
    %v864 = vunpack.c.h.b16 %v574
    %v865 = vunpack.c.l.b16 %v575
    %v866 = vunpack.c.h.b16 %v575
    %v867 = vunpack.c.l.b16 %v576
    %v868 = vunpack.c.h.b16 %v576
    %v869 = vunpack.c.l.b16 %v577
    %v870 = vunpack.c.h.b16 %v577
    %v871 = vunpack.c.l.b16 %v578
    %v872 = vunpack.c.h.b16 %v578
    %v873 = vunpack.c.l.b16 %v579
    %v874 = vunpack.c.h.b16 %v579
    %v875 = vunpack.c.l.b16 %v580
    %v876 = vunpack.c.h.b16 %v580
    %v877 = vunpack.c.l.b16 %v581
    %v878 = vunpack.c.h.b16 %v581
    %v879 = vunpack.c.l.b16 %v582
    %v880 = vunpack.c.h.b16 %v582
    %v881 = vunpack.c.l.b16 %v583
    %v882 = vunpack.c.h.b16 %v583
    %v883 = vunpack.c.l.b16 %v584
    %v884 = vunpack.c.h.b16 %v584
    %v885 = vunpack.c.l.b16 %v585
    %v886 = vunpack.c.h.b16 %v585
    %v887 = vunpack.c.l.b16 %v586
    %v888 = vunpack.c.h.b16 %v586
    %v889 = vunpack.c.l.b16 %v587
    %v890 = vunpack.c.h.b16 %v587
    %v891 = vunpack.c.l.b16 %v588
    %v892 = vunpack.c.h.b16 %v588
    %v893 = vunpack.c.l.b16 %v589
    %v894 = vunpack.c.h.b16 %v589
    %v895 = vunpack.c.l.b16 %v590
    %v896 = vunpack.c.h.b16 %v590
    %v897 = vunpack.c.l.b16 %v591
    %v898 = vunpack.c.h.b16 %v591
    %v899 = vunpack.c.l.b16 %v592
    %v900 = vunpack.c.h.b16 %v592
    %v901 = vunpack.c.l.b16 %v593
    %v902 = vunpack.c.h.b16 %v593
    %v903 = vunpack.c.l.b16 %v594
    %v904 = vunpack.c.h.b16 %v594
    %v905 = vunpack.c.l.b16 %v595
    %v906 = vunpack.c.h.b16 %v595
    %v907 = vunpack.c.l.b16 %v596
    %v908 = vunpack.c.h.b16 %v596
    %v909 = vunpack.c.l.b16 %v597
    %v910 = vunpack.c.h.b16 %v597
    %v911 = vunpack.c.l.b16 %v598
    %v912 = vunpack.c.h.b16 %v598
    %v913 = vunpack.c.l.b16 %v599
    %v914 = vunpack.c.h.b16 %v599
    %v915 = vunpack.c.l.b16 %v600
    %v916 = vunpack.c.h.b16 %v600
    %v917 = vunpack.c.l.b16 %v601
    %v918 = vunpack.c.h.b16 %v601
    %v919 = vunpack.c.l.b16 %v602
    %v920 = vunpack.c.h.b16 %v602
    %v921 = vunpack.c.l.b16 %v603
    %v922 = vunpack.c.h.b16 %v603
    %v923 = vunpack.c.l.b16 %v604
    %v924 = vunpack.c.h.b16 %v604
    %v925 = vunpack.c.l.b16 %v605
    %v926 = vunpack.c.h.b16 %v605
    %v927 = vunpack.c.l.b16 %v606
    %v928 = vunpack.c.h.b16 %v606
    %v929 = vunpack.c.l.b16 %v607
    %v930 = vunpack.c.h.b16 %v607
    %v931 = vunpack.c.l.b16 %v608
    %v932 = vunpack.c.h.b16 %v608
    %v933 = vunpack.c.l.b16 %v609
    %v934 = vunpack.c.h.b16 %v609
    %v935 = vunpack.c.l.b16 %v610
    %v936 = vunpack.c.h.b16 %v610
    %v937 = vunpack.c.l.b16 %v611
    %v938 = vunpack.c.h.b16 %v611
    %v939 = vunpack.c.l.b16 %v612
    %v940 = vunpack.c.h.b16 %v612
    %v941 = vunpack.c.l.b16 %v613
    %v942 = vunpack.c.h.b16 %v613
    %v943 = vunpack.c.l.b16 %v614
    %v944 = vunpack.c.h.b16 %v614
    %v945 = vunpack.c.l.b16 %v615
    %v946 = vunpack.c.h.b16 %v615
    %v947 = vunpack.c.l.b16 %v616
    %v948 = vunpack.c.h.b16 %v616
    %v949 = vunpack.c.l.b16 %v617
    %v950 = vunpack.c.h.b16 %v617
    %v951 = vunpack.c.l.b16 %v618
    %v952 = vunpack.c.h.b16 %v618
    %v953 = vunpack.c.l.b16 %v619
    %v954 = vunpack.c.h.b16 %v619
    %v955 = vunpack.c.l.b16 %v620
    %v956 = vunpack.c.h.b16 %v620
    %v957 = vunpack.c.l.b16 %v621
    %v958 = vunpack.c.h.b16 %v621
    %v959 = vunpack.c.l.b16 %v622
    %v960 = vunpack.c.h.b16 %v622
    %v961 = vunpack.c.l.b16 %v623
    %v962 = vunpack.c.h.b16 %v623
    %v963 = vunpack.c.l.b16 %v624
    %v964 = vunpack.c.h.b16 %v624
    %v965 = vunpack.c.l.b16 %v625
    %v966 = vunpack.c.h.b16 %v625
    %v967 = vunpack.c.l.b16 %v626
    %v968 = vunpack.c.h.b16 %v626
    %v969 = vunpack.c.l.b16 %v627
    %v970 = vunpack.c.h.b16 %v627
    %v971 = vunpack.c.l.b16 %v628
    %v972 = vunpack.c.h.b16 %v628
    %v973 = vunpack.c.l.b16 %v629
    %v974 = vunpack.c.h.b16 %v629
    %v975 = vunpack.c.l.b16 %v630
    %v976 = vunpack.c.h.b16 %v630
    %v977 = vunpack.c.l.b16 %v631
    %v978 = vunpack.c.h.b16 %v631
    %v979 = vunpack.c.l.b16 %v632
    %v980 = vunpack.c.h.b16 %v632
    %v981 = vunpack.c.l.b16 %v633
    %v982 = vunpack.c.h.b16 %v633
    %v983 = vunpack.c.l.b16 %v634
    %v984 = vunpack.c.h.b16 %v634
    %v985 = vunpack.c.l.b16 %v635
    %v986 = vunpack.c.h.b16 %v635
    %v987 = vunpack.c.l.b16 %v636
    %v988 = vunpack.c.h.b16 %v636
    %v989 = vunpack.c.l.b16 %v637
    %v990 = vunpack.c.h.b16 %v637
    %v991 = vunpack.c.l.b16 %v638
    %v992 = vunpack.c.h.b16 %v638
    %v993 = vunpack.c.l.b16 %v639
    %v994 = vunpack.c.h.b16 %v639
    %v995 = vunpack.c.l.b16 %v640
    %v996 = vunpack.c.h.b16 %v640
    %v997 = vunpack.c.l.b16 %v641
    %v998 = vunpack.c.h.b16 %v641
    %v999 = vunpack.c.l.b16 %v642
    %v1000 = vunpack.c.h.b16 %v642
    %v1001 = vunpack.c.l.b16 %v643
    %v1002 = vunpack.c.h.b16 %v643
    %v1003 = vunpack.c.l.b16 %v644
    %v1004 = vunpack.c.h.b16 %v644
    %v1005 = vunpack.c.l.b16 %v645
    %v1006 = vunpack.c.h.b16 %v645
    %v1007 = vunpack.c.l.b16 %v646
    %v1008 = vunpack.c.h.b16 %v646
    %v1009 = vunpack.c.l.b16 %v647
    %v1010 = vunpack.c.h.b16 %v647
    %v1011 = vunpack.c.l.b16 %v648
    %v1012 = vunpack.c.h.b16 %v648
    %v1013 = vunpack.c.l.b16 %v649
    %v1014 = vunpack.c.h.b16 %v649
    %v1015 = vunpack.c.l.b16 %v650
    %v1016 = vunpack.c.h.b16 %v650
    %v1017 = vunpack.c.l.b16 %v651
    %v1018 = vunpack.c.h.b16 %v651
    %v1019 = vunpack.c.l.b16 %v652
    %v1020 = vunpack.c.h.b16 %v652
    %v1021 = vunpack.c.l.b16 %v653
    %v1022 = vunpack.c.h.b16 %v653
    %v1023 = vunpack.c.l.b16 %v654
    %v1024 = vunpack.c.h.b16 %v654
    %v1025 = vunpack.c.l.b16 %v655
    %v1026 = vunpack.c.h.b16 %v655
    %v1027 = vunpack.c.l.b16 %v656
    %v1028 = vunpack.c.h.b16 %v656
    %v1029 = vunpack.c.l.b16 %v657
    %v1030 = vunpack.c.h.b16 %v657
    %v1031 = vunpack.c.l.b16 %v658
    %v1032 = vunpack.c.h.b16 %v658
    %v1033 = vunpack.c.l.b16 %v659
    %v1034 = vunpack.c.h.b16 %v659
    %v1035 = vunpack.c.l.b16 %v660
    %v1036 = vunpack.c.h.b16 %v660
    %v1037 = vunpack.c.l.b16 %v661
    %v1038 = vunpack.c.h.b16 %v661
    %v1039 = vunpack.c.l.b16 %v662
    %v1040 = vunpack.c.h.b16 %v662
    %v1041 = vunpack.c.l.b16 %v663
    %v1042 = vunpack.c.h.b16 %v663
    %v1043 = vunpack.c.l.b16 %v664
    %v1044 = vunpack.c.h.b16 %v664
    %v1045 = vunpack.c.l.b16 %v665
    %v1046 = vunpack.c.h.b16 %v665
    %v1047 = vunpack.c.l.b16 %v666
    %v1048 = vunpack.c.h.b16 %v666
    %v1049 = vunpack.c.l.b16 %v667
    %v1050 = vunpack.c.h.b16 %v667
    %v1051 = vunpack.c.l.b16 %v668
    %v1052 = vunpack.c.h.b16 %v668
    %v1053 = vunpack.c.l.b16 %v669
    %v1054 = vunpack.c.h.b16 %v669
    %v1055 = vunpack.c.l.b16 %v670
    %v1056 = vunpack.c.h.b16 %v670
    %v1057 = vunpack.c.l.b16 %v671
    %v1058 = vunpack.c.h.b16 %v671
    %v1059 = vunpack.c.l.b16 %v672
    %v1060 = vunpack.c.h.b16 %v672
    %v1061 = vunpack.c.l.b16 %v673
    %v1062 = vunpack.c.h.b16 %v673
    %v1063 = vunpack.c.l.b16 %v674
    %v1064 = vunpack.c.h.b16 %v674
    %v1065 = vunpack.c.l.b16 %v675
    %v1066 = vunpack.c.h.b16 %v675
    %v1067 = vunpack.c.l.b16 %v676
    %v1068 = vunpack.c.h.b16 %v676
    %v1069 = vunpack.c.l.b16 %v677
    %v1070 = vunpack.c.h.b16 %v677
    %v1071 = vunpack.c.l.b16 %v678
    %v1072 = vunpack.c.h.b16 %v678
    %v1073 = vunpack.c.l.b16 %v679
    %v1074 = vunpack.c.h.b16 %v679
    %v1075 = vunpack.c.l.b16 %v680
    %v1076 = vunpack.c.h.b16 %v680
    %v1077 = vunpack.c.l.b16 %v681
    %v1078 = vunpack.c.h.b16 %v681
    %v1079 = vunpack.c.l.b16 %v682
    %v1080 = vunpack.c.h.b16 %v682
    %v1081 = vunpack.c.l.b16 %v683
    %v1082 = vunpack.c.h.b16 %v683
    %v1083 = vunpack.c.l.b16 %v684
    %v1084 = vunpack.c.h.b16 %v684
    %v1085 = vunpack.c.l.b16 %v685
    %v1086 = vunpack.c.h.b16 %v685
    %v1087 = vunpack.c.l.b16 %v686
    %v1088 = vunpack.c.h.b16 %v686
    %v1089 = vunpack.c.l.b16 %v687
    %v1090 = vunpack.c.h.b16 %v687
    %v1091 = vunpack.c.l.b16 %v688
    %v1092 = vunpack.c.h.b16 %v688
    %v1093 = vunpack.c.l.b16 %v689
    %v1094 = vunpack.c.h.b16 %v689
    %v1095 = vunpack.c.l.b16 %v690
    %v1096 = vunpack.c.h.b16 %v690
    %v1097 = vpack.c.b16 %v845, %v841
    %v1098 = vpack.c.b16 %v846, %v842
    %v1099 = vpack.c.b16 %v847, %v843
    %v1100 = vpack.c.b16 %v848, %v844
    %v1101 = vpack.c.b16 %v853, %v849
    %v1102 = vpack.c.b16 %v854, %v850
    %v1103 = vpack.c.b16 %v855, %v851
    %v1104 = vpack.c.b16 %v856, %v852
    %v1105 = vpack.c.b16 %v861, %v857
    %v1106 = vpack.c.b16 %v862, %v858
    %v1107 = vpack.c.b16 %v863, %v859
    %v1108 = vpack.c.b16 %v864, %v860
    %v1109 = vpack.c.b16 %v869, %v865
    %v1110 = vpack.c.b16 %v870, %v866
    %v1111 = vpack.c.b16 %v871, %v867
    %v1112 = vpack.c.b16 %v872, %v868
    %v1113 = vpack.c.b16 %v877, %v873
    %v1114 = vpack.c.b16 %v878, %v874
    %v1115 = vpack.c.b16 %v879, %v875
    %v1116 = vpack.c.b16 %v880, %v876
    %v1117 = vpack.c.b16 %v885, %v881
    %v1118 = vpack.c.b16 %v886, %v882
    %v1119 = vpack.c.b16 %v887, %v883
    %v1120 = vpack.c.b16 %v888, %v884
    %v1121 = vpack.c.b16 %v893, %v889
    %v1122 = vpack.c.b16 %v894, %v890
    %v1123 = vpack.c.b16 %v895, %v891
    %v1124 = vpack.c.b16 %v896, %v892
    %v1125 = vpack.c.b16 %v901, %v897
    %v1126 = vpack.c.b16 %v902, %v898
    %v1127 = vpack.c.b16 %v903, %v899
    %v1128 = vpack.c.b16 %v904, %v900
    %v1129 = vpack.c.b16 %v909, %v905
    %v1130 = vpack.c.b16 %v910, %v906
    %v1131 = vpack.c.b16 %v911, %v907
    %v1132 = vpack.c.b16 %v912, %v908
    %v1133 = vpack.c.b16 %v917, %v913
    %v1134 = vpack.c.b16 %v918, %v914
    %v1135 = vpack.c.b16 %v919, %v915
    %v1136 = vpack.c.b16 %v920, %v916
    %v1137 = vpack.c.b16 %v925, %v921
    %v1138 = vpack.c.b16 %v926, %v922
    %v1139 = vpack.c.b16 %v927, %v923
    %v1140 = vpack.c.b16 %v928, %v924
    %v1141 = vpack.c.b16 %v933, %v929
    %v1142 = vpack.c.b16 %v934, %v930
    %v1143 = vpack.c.b16 %v935, %v931
    %v1144 = vpack.c.b16 %v936, %v932
    %v1145 = vpack.c.b16 %v941, %v937
    %v1146 = vpack.c.b16 %v942, %v938
    %v1147 = vpack.c.b16 %v943, %v939
    %v1148 = vpack.c.b16 %v944, %v940
    %v1149 = vpack.c.b16 %v949, %v945
    %v1150 = vpack.c.b16 %v950, %v946
    %v1151 = vpack.c.b16 %v951, %v947
    %v1152 = vpack.c.b16 %v952, %v948
    %v1153 = vpack.c.b16 %v957, %v953
    %v1154 = vpack.c.b16 %v958, %v954
    %v1155 = vpack.c.b16 %v959, %v955
    %v1156 = vpack.c.b16 %v960, %v956
    %v1157 = vpack.c.b16 %v965, %v961
    %v1158 = vpack.c.b16 %v966, %v962
    %v1159 = vpack.c.b16 %v967, %v963
    %v1160 = vpack.c.b16 %v968, %v964
    %v1161 = vpack.c.b16 %v973, %v969
    %v1162 = vpack.c.b16 %v974, %v970
    %v1163 = vpack.c.b16 %v975, %v971
    %v1164 = vpack.c.b16 %v976, %v972
    %v1165 = vpack.c.b16 %v981, %v977
    %v1166 = vpack.c.b16 %v982, %v978
    %v1167 = vpack.c.b16 %v983, %v979
    %v1168 = vpack.c.b16 %v984, %v980
    %v1169 = vpack.c.b16 %v989, %v985
    %v1170 = vpack.c.b16 %v990, %v986
    %v1171 = vpack.c.b16 %v991, %v987
    %v1172 = vpack.c.b16 %v992, %v988
    %v1173 = vpack.c.b16 %v997, %v993
    %v1174 = vpack.c.b16 %v998, %v994
    %v1175 = vpack.c.b16 %v999, %v995
    %v1176 = vpack.c.b16 %v1000, %v996
    %v1177 = vpack.c.b16 %v1005, %v1001
    %v1178 = vpack.c.b16 %v1006, %v1002
    %v1179 = vpack.c.b16 %v1007, %v1003
    %v1180 = vpack.c.b16 %v1008, %v1004
    %v1181 = vpack.c.b16 %v1013, %v1009
    %v1182 = vpack.c.b16 %v1014, %v1010
    %v1183 = vpack.c.b16 %v1015, %v1011
    %v1184 = vpack.c.b16 %v1016, %v1012
    %v1185 = vpack.c.b16 %v1021, %v1017
    %v1186 = vpack.c.b16 %v1022, %v1018
    %v1187 = vpack.c.b16 %v1023, %v1019
    %v1188 = vpack.c.b16 %v1024, %v1020
    %v1189 = vpack.c.b16 %v1029, %v1025
    %v1190 = vpack.c.b16 %v1030, %v1026
    %v1191 = vpack.c.b16 %v1031, %v1027
    %v1192 = vpack.c.b16 %v1032, %v1028
    %v1193 = vpack.c.b16 %v1037, %v1033
    %v1194 = vpack.c.b16 %v1038, %v1034
    %v1195 = vpack.c.b16 %v1039, %v1035
    %v1196 = vpack.c.b16 %v1040, %v1036
    %v1197 = vpack.c.b16 %v1045, %v1041
    %v1198 = vpack.c.b16 %v1046, %v1042
    %v1199 = vpack.c.b16 %v1047, %v1043
    %v1200 = vpack.c.b16 %v1048, %v1044
    %v1201 = vpack.c.b16 %v1053, %v1049
    %v1202 = vpack.c.b16 %v1054, %v1050
    %v1203 = vpack.c.b16 %v1055, %v1051
    %v1204 = vpack.c.b16 %v1056, %v1052
    %v1205 = vpack.c.b16 %v1061, %v1057
    %v1206 = vpack.c.b16 %v1062, %v1058
    %v1207 = vpack.c.b16 %v1063, %v1059
    %v1208 = vpack.c.b16 %v1064, %v1060
    %v1209 = vpack.c.b16 %v1069, %v1065
    %v1210 = vpack.c.b16 %v1070, %v1066
    %v1211 = vpack.c.b16 %v1071, %v1067
    %v1212 = vpack.c.b16 %v1072, %v1068
    %v1213 = vpack.c.b16 %v1077, %v1073
    %v1214 = vpack.c.b16 %v1078, %v1074
    %v1215 = vpack.c.b16 %v1079, %v1075
    %v1216 = vpack.c.b16 %v1080, %v1076
    %v1217 = vpack.c.b16 %v1085, %v1081
    %v1218 = vpack.c.b16 %v1086, %v1082
    %v1219 = vpack.c.b16 %v1087, %v1083
    %v1220 = vpack.c.b16 %v1088, %v1084
    %v1221 = vpack.c.b16 %v1093, %v1089
    %v1222 = vpack.c.b16 %v1094, %v1090
    %v1223 = vpack.c.b16 %v1095, %v1091
    %v1224 = vpack.c.b16 %v1096, %v1092
    %1353 = vmatprep.subr.bf16.mxu0 %v1098
    %1354 = vmatpush1.bf16.msra.mxu0 %v1097
    %1355 = vmatprep.subr.bf16.mxu0 %v1102
    %1356 = vmatpush1.bf16.msra.mxu0 %v1101
    %1357 = vmatprep.subr.bf16.mxu0 %v1106
    %1358 = vmatpush1.bf16.msra.mxu0 %v1105
    %1359 = vmatprep.subr.bf16.mxu0 %v1110
    %1360 = vmatpush1.bf16.msra.mxu0 %v1109
    %1361 = vmatprep.subr.bf16.mxu0 %v1114
    %1362 = vmatpush1.bf16.msra.mxu0 %v1113
    %1363 = vmatprep.subr.bf16.mxu0 %v1118
    %1364 = vmatpush1.bf16.msra.mxu0 %v1117
    %1365 = vmatprep.subr.bf16.mxu0 %v1122
    %1366 = vmatpush1.bf16.msra.mxu0 %v1121
    %1367 = vmatprep.subr.bf16.mxu0 %v1126
    %1368 = vmatpush1.bf16.msra.mxu0 %v1125
    %1369 = vmatprep.subr.bf16.mxu0 %v1130
    %1370 = vmatpush1.bf16.msra.mxu0 %v1129
    %1371 = vmatprep.subr.bf16.mxu0 %v1134
    %1372 = vmatpush1.bf16.msra.mxu0 %v1133
    %1373 = vmatprep.subr.bf16.mxu0 %v1138
    %1374 = vmatpush1.bf16.msra.mxu0 %v1137
    %1375 = vmatprep.subr.bf16.mxu0 %v1142
    %1376 = vmatpush1.bf16.msra.mxu0 %v1141
    %1377 = vmatprep.subr.bf16.mxu0 %v1146
    %1378 = vmatpush1.bf16.msra.mxu0 %v1145
    %1379 = vmatprep.subr.bf16.mxu0 %v1150
    %1380 = vmatpush1.bf16.msra.mxu0 %v1149
    %1381 = vmatprep.subr.bf16.mxu0 %v1154
    %1382 = vmatpush1.bf16.msra.mxu0 %v1153
    %1383 = vmatprep.subr.bf16.mxu0 %v1158
    %1384 = vmatpush1.bf16.msra.mxu0 %v1157
    %1385 = vmatprep.mubr.bf16.mxu0 %v560
    %1386 = vmatmul.mubr.bf16.gmra.mrb[0].mxu0 %v559
    %v1387 = vpop.f32.mrb[0].mxu0
    %v1388 = vadd.f32 %v696, %v1387
    %v1389 = vpop.f32.mrb[0].mxu0
    %v1390 = vadd.f32 %v700, %v1389
    %v1391 = vpop.f32.mrb[0].mxu0
    %v1392 = vpop.f32.mrb[0].mxu0
    %1393 = vdwg.mxu0
    %1394 = vmatprep.subr.bf16.mxu0 %v1162
    %1395 = vmatpush1.bf16.msra.mxu0 %v1161
    %1396 = vmatprep.subr.bf16.mxu0 %v1166
    %1397 = vmatpush1.bf16.msra.mxu0 %v1165
    %1398 = vmatprep.subr.bf16.mxu0 %v1170
    %1399 = vmatpush1.bf16.msra.mxu0 %v1169
    %1400 = vmatprep.subr.bf16.mxu0 %v1174
    %1401 = vmatpush1.bf16.msra.mxu0 %v1173
    %1402 = vmatprep.subr.bf16.mxu0 %v1178
    %1403 = vmatpush1.bf16.msra.mxu0 %v1177
    %1404 = vmatprep.subr.bf16.mxu0 %v1182
    %1405 = vmatpush1.bf16.msra.mxu0 %v1181
    %1406 = vmatprep.subr.bf16.mxu0 %v1186
    %1407 = vmatpush1.bf16.msra.mxu0 %v1185
    %1408 = vmatprep.subr.bf16.mxu0 %v1190
    %1409 = vmatpush1.bf16.msra.mxu0 %v1189
    %1410 = vmatprep.subr.bf16.mxu0 %v1194
    %1411 = vmatpush1.bf16.msra.mxu0 %v1193
    %1412 = vmatprep.subr.bf16.mxu0 %v1198
    %1413 = vmatpush1.bf16.msra.mxu0 %v1197
    %1414 = vmatprep.subr.bf16.mxu0 %v1202
    %1415 = vmatpush1.bf16.msra.mxu0 %v1201
    %1416 = vmatprep.subr.bf16.mxu0 %v1206
    %1417 = vmatpush1.bf16.msra.mxu0 %v1205
    %1418 = vmatprep.subr.bf16.mxu0 %v1210
    %1419 = vmatpush1.bf16.msra.mxu0 %v1209
    %1420 = vmatprep.subr.bf16.mxu0 %v1214
    %1421 = vmatpush1.bf16.msra.mxu0 %v1213
    %1422 = vmatprep.subr.bf16.mxu0 %v1218
    %1423 = vmatpush1.bf16.msra.mxu0 %v1217
    %1424 = vmatprep.subr.bf16.mxu0 %v1222
    %1425 = vmatpush1.bf16.msra.mxu0 %v1221
    %1426 = vmatprep.mubr.bf16.mxu0 %v562
    %1427 = vmatmul.mubr.bf16.gmra.mrb[0].mxu0 %v561
    %v1428 = vpop.f32.mrb[0].mxu0
    %v1429 = vadd.f32 %v1388, %v1428
    %v1430 = vpop.f32.mrb[0].mxu0
    %v1431 = vadd.f32 %v1390, %v1430
    %v1432 = vpop.f32.mrb[0].mxu0
    %v1433 = vpop.f32.mrb[0].mxu0
    %1434 = vdwg.mxu0
    %1435 = vmatprep.subr.bf16.mxu0 %v1100
    %1436 = vmatpush1.bf16.msra.mxu0 %v1099
    %1437 = vmatprep.subr.bf16.mxu0 %v1104
    %1438 = vmatpush1.bf16.msra.mxu0 %v1103
    %1439 = vmatprep.subr.bf16.mxu0 %v1108
    %1440 = vmatpush1.bf16.msra.mxu0 %v1107
    %1441 = vmatprep.subr.bf16.mxu0 %v1112
    %1442 = vmatpush1.bf16.msra.mxu0 %v1111
    %1443 = vmatprep.subr.bf16.mxu0 %v1116
    %1444 = vmatpush1.bf16.msra.mxu0 %v1115
    %1445 = vmatprep.subr.bf16.mxu0 %v1120
    %1446 = vmatpush1.bf16.msra.mxu0 %v1119
    %1447 = vmatprep.subr.bf16.mxu0 %v1124
    %1448 = vmatpush1.bf16.msra.mxu0 %v1123
    %1449 = vmatprep.subr.bf16.mxu0 %v1128
    %1450 = vmatpush1.bf16.msra.mxu0 %v1127
    %1451 = vmatprep.subr.bf16.mxu0 %v1132
    %1452 = vmatpush1.bf16.msra.mxu0 %v1131
    %1453 = vmatprep.subr.bf16.mxu0 %v1136
    %1454 = vmatpush1.bf16.msra.mxu0 %v1135
    %1455 = vmatprep.subr.bf16.mxu0 %v1140
    %1456 = vmatpush1.bf16.msra.mxu0 %v1139
    %1457 = vmatprep.subr.bf16.mxu0 %v1144
    %1458 = vmatpush1.bf16.msra.mxu0 %v1143
    %1459 = vmatprep.subr.bf16.mxu0 %v1148
    %1460 = vmatpush1.bf16.msra.mxu0 %v1147
    %1461 = vmatprep.subr.bf16.mxu0 %v1152
    %1462 = vmatpush1.bf16.msra.mxu0 %v1151
    %1463 = vmatprep.subr.bf16.mxu0 %v1156
    %1464 = vmatpush1.bf16.msra.mxu0 %v1155
    %1465 = vmatprep.subr.bf16.mxu0 %v1160
    %1466 = vmatpush1.bf16.msra.mxu0 %v1159
    %1467 = vmatprep.mubr.bf16.mxu0 %v560
    %1468 = vmatmul.mubr.bf16.gmra.mrb[0].mxu0 %v559
    %v1469 = vpop.f32.mrb[0].mxu0
    %v1470 = vadd.f32 %v704, %v1469
    %v1471 = vpop.f32.mrb[0].mxu0
    %v1472 = vadd.f32 %v708, %v1471
    %v1473 = vpop.f32.mrb[0].mxu0
    %v1474 = vpop.f32.mrb[0].mxu0
    %1475 = vdwg.mxu0
    %1476 = vmatprep.subr.bf16.mxu0 %v1164
    %1477 = vmatpush1.bf16.msra.mxu0 %v1163
    %1478 = vmatprep.subr.bf16.mxu0 %v1168
    %1479 = vmatpush1.bf16.msra.mxu0 %v1167
    %1480 = vmatprep.subr.bf16.mxu0 %v1172
    %1481 = vmatpush1.bf16.msra.mxu0 %v1171
    %1482 = vmatprep.subr.bf16.mxu0 %v1176
    %1483 = vmatpush1.bf16.msra.mxu0 %v1175
    %1484 = vmatprep.subr.bf16.mxu0 %v1180
    %1485 = vmatpush1.bf16.msra.mxu0 %v1179
    %1486 = vmatprep.subr.bf16.mxu0 %v1184
    %1487 = vmatpush1.bf16.msra.mxu0 %v1183
    %1488 = vmatprep.subr.bf16.mxu0 %v1188
    %1489 = vmatpush1.bf16.msra.mxu0 %v1187
    %1490 = vmatprep.subr.bf16.mxu0 %v1192
    %1491 = vmatpush1.bf16.msra.mxu0 %v1191
    %1492 = vmatprep.subr.bf16.mxu0 %v1196
    %1493 = vmatpush1.bf16.msra.mxu0 %v1195
    %1494 = vmatprep.subr.bf16.mxu0 %v1200
    %1495 = vmatpush1.bf16.msra.mxu0 %v1199
    %1496 = vmatprep.subr.bf16.mxu0 %v1204
    %1497 = vmatpush1.bf16.msra.mxu0 %v1203
    %1498 = vmatprep.subr.bf16.mxu0 %v1208
    %1499 = vmatpush1.bf16.msra.mxu0 %v1207
    %1500 = vmatprep.subr.bf16.mxu0 %v1212
    %1501 = vmatpush1.bf16.msra.mxu0 %v1211
    %1502 = vmatprep.subr.bf16.mxu0 %v1216
    %1503 = vmatpush1.bf16.msra.mxu0 %v1215
    %1504 = vmatprep.subr.bf16.mxu0 %v1220
    %1505 = vmatpush1.bf16.msra.mxu0 %v1219
    %1506 = vmatprep.subr.bf16.mxu0 %v1224
    %1507 = vmatpush1.bf16.msra.mxu0 %v1223
    %1508 = vmatprep.mubr.bf16.mxu0 %v562
    %1509 = vmatmul.mubr.bf16.gmra.mrb[0].mxu0 %v561
    %v1510 = vpop.f32.mrb[0].mxu0
    %v1511 = vadd.f32 %v1470, %v1510
    %v1512 = vpop.f32.mrb[0].mxu0
    %v1513 = vadd.f32 %v1472, %v1512
    %v1514 = vpop.f32.mrb[0].mxu0
    %v1515 = vpop.f32.mrb[0].mxu0
    %1516 = vdwg.mxu0
    %v1517 = vrot.slane %v1429, 4
    %v1518 = vadd.f32 %v1429, %v1517
    %v1519 = vrot.slane %v1518, 2
    %v1520 = vadd.f32 %v1518, %v1519
    %v1521 = vrot.slane %v1520, 1
    %v1522 = vadd.f32 %v1520, %v1521
    %v1523 = vrot.slane %v1431, 4
    %v1524 = vadd.f32 %v1431, %v1523
    %v1525 = vrot.slane %v1524, 2
    %v1526 = vadd.f32 %v1524, %v1525
    %v1527 = vrot.slane %v1526, 1
    %v1528 = vadd.f32 %v1526, %v1527
    %v1529 = vrot.slane %v1511, 4
    %v1530 = vadd.f32 %v1511, %v1529
    %v1531 = vrot.slane %v1530, 2
    %v1532 = vadd.f32 %v1530, %v1531
    %v1533 = vrot.slane %v1532, 1
    %v1534 = vadd.f32 %v1532, %v1533
    %v1535 = vrot.slane %v1513, 4
    %v1536 = vadd.f32 %v1513, %v1535
    %v1537 = vrot.slane %v1536, 2
    %v1538 = vadd.f32 %v1536, %v1537
    %v1539 = vrot.slane %v1538, 1
    %v1540 = vadd.f32 %v1538, %v1539
    %v1541 = vrcp.pop 8.0
    %v1542 = vmul.f32 %v1522, %v1541
    %v1543 = vmul.f32 %v1528, %v1541
    %v1544 = vmul.f32 %v1534, %v1541
    %v1545 = vmul.f32 %v1540, %v1541
    %v1546 = vmul.f32 %v1429, %v1429
    %v1547 = vmul.f32 %v1431, %v1431
    %v1548 = vmul.f32 %v1511, %v1511
    %v1549 = vmul.f32 %v1513, %v1513
    %v1550 = vrot.slane %v1546, 4
    %v1551 = vadd.f32 %v1546, %v1550
    %v1552 = vrot.slane %v1551, 2
    %v1553 = vadd.f32 %v1551, %v1552
    %v1554 = vrot.slane %v1553, 1
    %v1555 = vadd.f32 %v1553, %v1554
    %v1556 = vrot.slane %v1547, 4
    %v1557 = vadd.f32 %v1547, %v1556
    %v1558 = vrot.slane %v1557, 2
    %v1559 = vadd.f32 %v1557, %v1558
    %v1560 = vrot.slane %v1559, 1
    %v1561 = vadd.f32 %v1559, %v1560
    %v1562 = vrot.slane %v1548, 4
    %v1563 = vadd.f32 %v1548, %v1562
    %v1564 = vrot.slane %v1563, 2
    %v1565 = vadd.f32 %v1563, %v1564
    %v1566 = vrot.slane %v1565, 1
    %v1567 = vadd.f32 %v1565, %v1566
    %v1568 = vrot.slane %v1549, 4
    %v1569 = vadd.f32 %v1549, %v1568
    %v1570 = vrot.slane %v1569, 2
    %v1571 = vadd.f32 %v1569, %v1570
    %v1572 = vrot.slane %v1571, 1
    %v1573 = vadd.f32 %v1571, %v1572
    %v1574 = vmul.f32 %v1555, %v1541
    %v1575 = vmul.f32 %v1561, %v1541
    %v1576 = vmul.f32 %v1567, %v1541
    %v1577 = vmul.f32 %v1573, %v1541
    %v1578 = vmul.f32 %v1542, %v1542
    %v1579 = vmul.f32 %v1543, %v1543
    %v1580 = vmul.f32 %v1544, %v1544
    %v1581 = vmul.f32 %v1545, %v1545
    %v1582 = vsub.f32 %v1574, %v1578
    %v1583 = vsub.f32 %v1575, %v1579
    %v1584 = vsub.f32 %v1576, %v1580
    %v1585 = vsub.f32 %v1577, %v1581
    %v1586 = vsub.f32 %v1429, %v1542
    %v1587 = vsub.f32 %v1431, %v1543
    %v1588 = vsub.f32 %v1511, %v1544
    %v1589 = vsub.f32 %v1513, %v1545
    %v1590 = vadd.f32 %v1582, 1e-05
    %v1591 = vadd.f32 %v1583, 1e-05
    %v1592 = vadd.f32 %v1584, 1e-05
    %v1593 = vadd.f32 %v1585, 1e-05
    %v1594 = vrsqrt.pop %v1590
    %v1595 = vrsqrt.pop %v1591
    %v1596 = vrsqrt.pop %v1592
    %v1597 = vrsqrt.pop %v1593
    %v1598 = vmul.f32 %v1586, %v1594
    %v1599 = vmul.f32 %v1587, %v1595
    %v1600 = vmul.f32 %v1588, %v1596
    %v1601 = vmul.f32 %v1589, %v1597
    %v1602 = vld [vmem:[%s5] sm:$0xf]
    %v1604 = vlaneseq
    %v1605 = vshrl.u32 %v1604, 7
    %v1606 = vsub.s32 0, %v1605
    %v1607 = vrot.slane %v1602, %v1606
    %v1608 = vlaneseq
    %v1609 = vshrl.u32 %v1608, 7
    %v1610 = vsub.s32 1, %v1609
    %v1611 = vrot.slane %v1602, %v1610
    %v1612 = vlaneseq
    %v1613 = vshrl.u32 %v1612, 7
    %v1614 = vsub.s32 2, %v1613
    %v1615 = vrot.slane %v1602, %v1614
    %v1616 = vlaneseq
    %v1617 = vshrl.u32 %v1616, 7
    %v1618 = vsub.s32 3, %v1617
    %v1619 = vrot.slane %v1602, %v1618
    %v1624 = vmul.f32 %v1598, %v1607
    %v1625 = vmul.f32 %v1599, %v1611
    %v1626 = vmul.f32 %v1600, %v1615
    %v1627 = vmul.f32 %v1601, %v1619
    %v1628 = vld [vmem:[%s6] sm:$0xf]
    %v1630 = vlaneseq
    %v1631 = vshrl.u32 %v1630, 7
    %v1632 = vsub.s32 0, %v1631
    %v1633 = vrot.slane %v1628, %v1632
    %v1634 = vlaneseq
    %v1635 = vshrl.u32 %v1634, 7
    %v1636 = vsub.s32 1, %v1635
    %v1637 = vrot.slane %v1628, %v1636
    %v1638 = vlaneseq
    %v1639 = vshrl.u32 %v1638, 7
    %v1640 = vsub.s32 2, %v1639
    %v1641 = vrot.slane %v1628, %v1640
    %v1642 = vlaneseq
    %v1643 = vshrl.u32 %v1642, 7
    %v1644 = vsub.s32 3, %v1643
    %v1645 = vrot.slane %v1628, %v1644
    %v1650 = vadd.f32 %v1624, %v1633
    %v1651 = vadd.f32 %v1625, %v1637
    %v1652 = vadd.f32 %v1626, %v1641
    %v1653 = vadd.f32 %v1627, %v1645
    %vm1654 = vcmp.gt.f32.partialorder %v1650, 0.0
    %vm1655 = vcmp.gt.f32.partialorder %v1651, 0.0
    %vm1656 = vcmp.gt.f32.partialorder %v1652, 0.0
    %vm1657 = vcmp.gt.f32.partialorder %v1653, 0.0
    %v1658 = vmul.f32 %v1650, 0.2
    %v1659 = vmul.f32 %v1651, 0.2
    %v1660 = vmul.f32 %v1652, 0.2
    %v1661 = vmul.f32 %v1653, 0.2
    %v1662 = vsel %vm1654, %v1650, %v1658
    %v1663 = vsel %vm1655, %v1651, %v1659
    %v1664 = vsel %vm1656, %v1652, %v1660
    %v1665 = vsel %vm1657, %v1653, %v1661
    %v1666 = vpack.c.bf16 %v1662, %v1662
    %v1667 = vpack.c.bf16 %v1663, %v1663
    %v1668 = vpack.c.bf16 %v1664, %v1664
    %v1669 = vpack.c.bf16 %v1665, %v1665
    %v1670 = vld [vmem:[%s7] sm:$0xf]
    %v1671 = vld [vmem:[%s7 + $0x4] sm:$0xf]
    %v1672 = vld [vmem:[%s7 + $0x8] sm:$0xf]
    %v1673 = vld [vmem:[%s7 + $0xc] sm:$0xf]
    %v1674 = vld [vmem:[%s7 + $0x10] sm:$0xf]
    %v1675 = vld [vmem:[%s7 + $0x14] sm:$0xf]
    %v1676 = vld [vmem:[%s7 + $0x18] sm:$0xf]
    %v1677 = vld [vmem:[%s7 + $0x1c] sm:$0xf]
    %v1678 = vld [vmem:[%s7 + $0x20] sm:$0xf]
    %v1679 = vld [vmem:[%s7 + $0x24] sm:$0xf]
    %v1680 = vld [vmem:[%s7 + $0x28] sm:$0xf]
    %v1681 = vld [vmem:[%s7 + $0x2c] sm:$0xf]
    %v1682 = vld [vmem:[%s7 + $0x30] sm:$0xf]
    %v1683 = vld [vmem:[%s7 + $0x34] sm:$0xf]
    %v1684 = vld [vmem:[%s7 + $0x38] sm:$0xf]
    %v1685 = vld [vmem:[%s7 + $0x3c] sm:$0xf]
    %v1686 = vld [vmem:[%s7 + $0x40] sm:$0xf]
    %v1687 = vld [vmem:[%s7 + $0x44] sm:$0xf]
    %v1688 = vld [vmem:[%s7 + $0x48] sm:$0xf]
    %v1689 = vld [vmem:[%s7 + $0x4c] sm:$0xf]
    %v1690 = vld [vmem:[%s7 + $0x50] sm:$0xf]
    %v1691 = vld [vmem:[%s7 + $0x54] sm:$0xf]
    %v1692 = vld [vmem:[%s7 + $0x58] sm:$0xf]
    %v1693 = vld [vmem:[%s7 + $0x5c] sm:$0xf]
    %v1694 = vld [vmem:[%s7 + $0x60] sm:$0xf]
    %v1695 = vld [vmem:[%s7 + $0x64] sm:$0xf]
    %v1696 = vld [vmem:[%s7 + $0x68] sm:$0xf]
    %v1697 = vld [vmem:[%s7 + $0x6c] sm:$0xf]
    %v1698 = vld [vmem:[%s7 + $0x70] sm:$0xf]
    %v1699 = vld [vmem:[%s7 + $0x74] sm:$0xf]
    %v1700 = vld [vmem:[%s7 + $0x78] sm:$0xf]
    %v1701 = vld [vmem:[%s7 + $0x7c] sm:$0xf]
    %v1702 = vld [vmem:[%s7 + $0x80] sm:$0xf]
    %v1703 = vld [vmem:[%s7 + $0x84] sm:$0xf]
    %v1704 = vld [vmem:[%s7 + $0x88] sm:$0xf]
    %v1705 = vld [vmem:[%s7 + $0x8c] sm:$0xf]
    %v1706 = vld [vmem:[%s7 + $0x90] sm:$0xf]
    %v1707 = vld [vmem:[%s7 + $0x94] sm:$0xf]
    %v1708 = vld [vmem:[%s7 + $0x98] sm:$0xf]
    %v1709 = vld [vmem:[%s7 + $0x9c] sm:$0xf]
    %v1710 = vld [vmem:[%s7 + $0xa0] sm:$0xf]
    %v1711 = vld [vmem:[%s7 + $0xa4] sm:$0xf]
    %v1712 = vld [vmem:[%s7 + $0xa8] sm:$0xf]
    %v1713 = vld [vmem:[%s7 + $0xac] sm:$0xf]
    %v1714 = vld [vmem:[%s7 + $0xb0] sm:$0xf]
    %v1715 = vld [vmem:[%s7 + $0xb4] sm:$0xf]
    %v1716 = vld [vmem:[%s7 + $0xb8] sm:$0xf]
    %v1717 = vld [vmem:[%s7 + $0xbc] sm:$0xf]
    %v1718 = vld [vmem:[%s7 + $0xc0] sm:$0xf]
    %v1719 = vld [vmem:[%s7 + $0xc4] sm:$0xf]
    %v1720 = vld [vmem:[%s7 + $0xc8] sm:$0xf]
    %v1721 = vld [vmem:[%s7 + $0xcc] sm:$0xf]
    %v1722 = vld [vmem:[%s7 + $0xd0] sm:$0xf]
    %v1723 = vld [vmem:[%s7 + $0xd4] sm:$0xf]
    %v1724 = vld [vmem:[%s7 + $0xd8] sm:$0xf]
    %v1725 = vld [vmem:[%s7 + $0xdc] sm:$0xf]
    %v1726 = vld [vmem:[%s7 + $0xe0] sm:$0xf]
    %v1727 = vld [vmem:[%s7 + $0xe4] sm:$0xf]
    %v1728 = vld [vmem:[%s7 + $0xe8] sm:$0xf]
    %v1729 = vld [vmem:[%s7 + $0xec] sm:$0xf]
    %v1730 = vld [vmem:[%s7 + $0xf0] sm:$0xf]
    %v1731 = vld [vmem:[%s7 + $0xf4] sm:$0xf]
    %v1732 = vld [vmem:[%s7 + $0xf8] sm:$0xf]
    %v1733 = vld [vmem:[%s7 + $0xfc] sm:$0xf]
    %v1734 = vld [vmem:[%s8] sm:$0x1]
    %v1736 = vlaneseq
    %v1737 = vshrl.u32 %v1736, 7
    %v1738 = vsub.s32 0, %v1737
    %v1739 = vrot.slane %v1734, %v1738
    %v1805 = vunpack.c.l.b16 %v1670
    %v1806 = vunpack.c.l.b16 %v1671
    %v1807 = vunpack.c.l.b16 %v1672
    %v1808 = vunpack.c.l.b16 %v1673
    %v1809 = vunpack.c.l.b16 %v1674
    %v1810 = vunpack.c.l.b16 %v1675
    %v1811 = vunpack.c.l.b16 %v1676
    %v1812 = vunpack.c.l.b16 %v1677
    %v1813 = vunpack.c.l.b16 %v1678
    %v1814 = vunpack.c.l.b16 %v1679
    %v1815 = vunpack.c.l.b16 %v1680
    %v1816 = vunpack.c.l.b16 %v1681
    %v1817 = vunpack.c.l.b16 %v1682
    %v1818 = vunpack.c.l.b16 %v1683
    %v1819 = vunpack.c.l.b16 %v1684
    %v1820 = vunpack.c.l.b16 %v1685
    %v1821 = vunpack.c.l.b16 %v1686
    %v1822 = vunpack.c.l.b16 %v1687
    %v1823 = vunpack.c.l.b16 %v1688
    %v1824 = vunpack.c.l.b16 %v1689
    %v1825 = vunpack.c.l.b16 %v1690
    %v1826 = vunpack.c.l.b16 %v1691
    %v1827 = vunpack.c.l.b16 %v1692
    %v1828 = vunpack.c.l.b16 %v1693
    %v1829 = vunpack.c.l.b16 %v1694
    %v1830 = vunpack.c.l.b16 %v1695
    %v1831 = vunpack.c.l.b16 %v1696
    %v1832 = vunpack.c.l.b16 %v1697
    %v1833 = vunpack.c.l.b16 %v1698
    %v1834 = vunpack.c.l.b16 %v1699
    %v1835 = vunpack.c.l.b16 %v1700
    %v1836 = vunpack.c.l.b16 %v1701
    %v1837 = vunpack.c.l.b16 %v1702
    %v1838 = vunpack.c.l.b16 %v1703
    %v1839 = vunpack.c.l.b16 %v1704
    %v1840 = vunpack.c.l.b16 %v1705
    %v1841 = vunpack.c.l.b16 %v1706
    %v1842 = vunpack.c.l.b16 %v1707
    %v1843 = vunpack.c.l.b16 %v1708
    %v1844 = vunpack.c.l.b16 %v1709
    %v1845 = vunpack.c.l.b16 %v1710
    %v1846 = vunpack.c.l.b16 %v1711
    %v1847 = vunpack.c.l.b16 %v1712
    %v1848 = vunpack.c.l.b16 %v1713
    %v1849 = vunpack.c.l.b16 %v1714
    %v1850 = vunpack.c.l.b16 %v1715
    %v1851 = vunpack.c.l.b16 %v1716
    %v1852 = vunpack.c.l.b16 %v1717
    %v1853 = vunpack.c.l.b16 %v1718
    %v1854 = vunpack.c.l.b16 %v1719
    %v1855 = vunpack.c.l.b16 %v1720
    %v1856 = vunpack.c.l.b16 %v1721
    %v1857 = vunpack.c.l.b16 %v1722
    %v1858 = vunpack.c.l.b16 %v1723
    %v1859 = vunpack.c.l.b16 %v1724
    %v1860 = vunpack.c.l.b16 %v1725
    %v1861 = vunpack.c.l.b16 %v1726
    %v1862 = vunpack.c.l.b16 %v1727
    %v1863 = vunpack.c.l.b16 %v1728
    %v1864 = vunpack.c.l.b16 %v1729
    %v1865 = vunpack.c.l.b16 %v1730
    %v1866 = vunpack.c.l.b16 %v1731
    %v1867 = vunpack.c.l.b16 %v1732
    %v1868 = vunpack.c.l.b16 %v1733
    %v1869 = vpack.c.b16 %v1806, %v1805
    %v1870 = vpack.c.b16 %v1808, %v1807
    %v1871 = vpack.c.b16 %v1810, %v1809
    %v1872 = vpack.c.b16 %v1812, %v1811
    %v1873 = vpack.c.b16 %v1814, %v1813
    %v1874 = vpack.c.b16 %v1816, %v1815
    %v1875 = vpack.c.b16 %v1818, %v1817
    %v1876 = vpack.c.b16 %v1820, %v1819
    %v1877 = vpack.c.b16 %v1822, %v1821
    %v1878 = vpack.c.b16 %v1824, %v1823
    %v1879 = vpack.c.b16 %v1826, %v1825
    %v1880 = vpack.c.b16 %v1828, %v1827
    %v1881 = vpack.c.b16 %v1830, %v1829
    %v1882 = vpack.c.b16 %v1832, %v1831
    %v1883 = vpack.c.b16 %v1834, %v1833
    %v1884 = vpack.c.b16 %v1836, %v1835
    %v1885 = vpack.c.b16 %v1838, %v1837
    %v1886 = vpack.c.b16 %v1840, %v1839
    %v1887 = vpack.c.b16 %v1842, %v1841
    %v1888 = vpack.c.b16 %v1844, %v1843
    %v1889 = vpack.c.b16 %v1846, %v1845
    %v1890 = vpack.c.b16 %v1848, %v1847
    %v1891 = vpack.c.b16 %v1850, %v1849
    %v1892 = vpack.c.b16 %v1852, %v1851
    %v1893 = vpack.c.b16 %v1854, %v1853
    %v1894 = vpack.c.b16 %v1856, %v1855
    %v1895 = vpack.c.b16 %v1858, %v1857
    %v1896 = vpack.c.b16 %v1860, %v1859
    %v1897 = vpack.c.b16 %v1862, %v1861
    %v1898 = vpack.c.b16 %v1864, %v1863
    %v1899 = vpack.c.b16 %v1866, %v1865
    %v1900 = vpack.c.b16 %v1868, %v1867
    %1933 = vmatprep.subr.bf16.mxu0 0
    %1934 = vmatpush1.bf16.msra.mxu0 %v1869
    %1935 = vmatprep.subr.bf16.mxu0 0
    %1936 = vmatpush1.bf16.msra.mxu0 %v1870
    %1937 = vmatprep.subr.bf16.mxu0 0
    %1938 = vmatpush1.bf16.msra.mxu0 %v1871
    %1939 = vmatprep.subr.bf16.mxu0 0
    %1940 = vmatpush1.bf16.msra.mxu0 %v1872
    %1941 = vmatprep.subr.bf16.mxu0 0
    %1942 = vmatpush1.bf16.msra.mxu0 %v1873
    %1943 = vmatprep.subr.bf16.mxu0 0
    %1944 = vmatpush1.bf16.msra.mxu0 %v1874
    %1945 = vmatprep.subr.bf16.mxu0 0
    %1946 = vmatpush1.bf16.msra.mxu0 %v1875
    %1947 = vmatprep.subr.bf16.mxu0 0
    %1948 = vmatpush1.bf16.msra.mxu0 %v1876
    %1949 = vmatprep.subr.bf16.mxu0 0
    %1950 = vmatpush1.bf16.msra.mxu0 %v1877
    %1951 = vmatprep.subr.bf16.mxu0 0
    %1952 = vmatpush1.bf16.msra.mxu0 %v1878
    %1953 = vmatprep.subr.bf16.mxu0 0
    %1954 = vmatpush1.bf16.msra.mxu0 %v1879
    %1955 = vmatprep.subr.bf16.mxu0 0
    %1956 = vmatpush1.bf16.msra.mxu0 %v1880
    %1957 = vmatprep.subr.bf16.mxu0 0
    %1958 = vmatpush1.bf16.msra.mxu0 %v1881
    %1959 = vmatprep.subr.bf16.mxu0 0
    %1960 = vmatpush1.bf16.msra.mxu0 %v1882
    %1961 = vmatprep.subr.bf16.mxu0 0
    %1962 = vmatpush1.bf16.msra.mxu0 %v1883
    %1963 = vmatprep.subr.bf16.mxu0 0
    %1964 = vmatpush1.bf16.msra.mxu0 %v1884
    %1965 = vmatprep.mubr.bf16.mxu0 %v1667
    %1966 = vmatmul.mubr.bf16.gmra.mrb[0].mxu0 %v1666
    %v1967 = vpop.f32.mrb[0].mxu0
    %v1968 = vadd.f32 %v1739, %v1967
    %v1969 = vpop.f32.mrb[0].mxu0
    %v1970 = vpop.f32.mrb[0].mxu0
    %v1971 = vpop.f32.mrb[0].mxu0
    %1972 = vdwg.mxu0
    %1973 = vmatprep.subr.bf16.mxu0 0
    %1974 = vmatpush1.bf16.msra.mxu0 %v1885
    %1975 = vmatprep.subr.bf16.mxu0 0
    %1976 = vmatpush1.bf16.msra.mxu0 %v1886
    %1977 = vmatprep.subr.bf16.mxu0 0
    %1978 = vmatpush1.bf16.msra.mxu0 %v1887
    %1979 = vmatprep.subr.bf16.mxu0 0
    %1980 = vmatpush1.bf16.msra.mxu0 %v1888
    %1981 = vmatprep.subr.bf16.mxu0 0
    %1982 = vmatpush1.bf16.msra.mxu0 %v1889
    %1983 = vmatprep.subr.bf16.mxu0 0
    %1984 = vmatpush1.bf16.msra.mxu0 %v1890
    %1985 = vmatprep.subr.bf16.mxu0 0
    %1986 = vmatpush1.bf16.msra.mxu0 %v1891
    %1987 = vmatprep.subr.bf16.mxu0 0
    %1988 = vmatpush1.bf16.msra.mxu0 %v1892
    %1989 = vmatprep.subr.bf16.mxu0 0
    %1990 = vmatpush1.bf16.msra.mxu0 %v1893
    %1991 = vmatprep.subr.bf16.mxu0 0
    %1992 = vmatpush1.bf16.msra.mxu0 %v1894
    %1993 = vmatprep.subr.bf16.mxu0 0
    %1994 = vmatpush1.bf16.msra.mxu0 %v1895
    %1995 = vmatprep.subr.bf16.mxu0 0
    %1996 = vmatpush1.bf16.msra.mxu0 %v1896
    %1997 = vmatprep.subr.bf16.mxu0 0
    %1998 = vmatpush1.bf16.msra.mxu0 %v1897
    %1999 = vmatprep.subr.bf16.mxu0 0
    %2000 = vmatpush1.bf16.msra.mxu0 %v1898
    %2001 = vmatprep.subr.bf16.mxu0 0
    %2002 = vmatpush1.bf16.msra.mxu0 %v1899
    %2003 = vmatprep.subr.bf16.mxu0 0
    %2004 = vmatpush1.bf16.msra.mxu0 %v1900
    %2005 = vmatprep.mubr.bf16.mxu0 %v1669
    %2006 = vmatmul.mubr.bf16.gmra.mrb[0].mxu0 %v1668
    %v2007 = vpop.f32.mrb[0].mxu0
    %v2008 = vadd.f32 %v1968, %v2007
    %v2009 = vpop.f32.mrb[0].mxu0
    %v2010 = vpop.f32.mrb[0].mxu0
    %v2011 = vpop.f32.mrb[0].mxu0
    %2012 = vdwg.mxu0
    %v2013 = vld [vmem:[%s9] sm:$0xff]
    %v2014 = vmul.f32 %v2008, 0.5
    %v2015 = vmul.f32 %v2014, 1.442695
    %v2016 = vpow.pop %v2015
    %2018 = vrot.lane.b32.xlu0 %v2016, 112
    %v2019 = vpop.permute.xlu0 %2018
    %v2021 = vmul.f32 %v2013, %v2019
    %v2022 = vadd.f32 %v2021, %v2008
    %vm2023 = vcmask 130048
    %2024 = vst.msk [vmem:[#allocation5] sm:$0xff] %vm2023, %v2022
    // Predicated region
    $region46: #{encoder_forward.1} parent=1 // pred_check
      _
    $region47: #{encoder_forward.1} parent=1 // pred_check_branch
      %2026 = sbr.rel (0) target = $region49
    $region48: #{encoder_forward.1} parent=1 // pred_region
      %s2028 = ssub.s32 128, 128
      %2029 = vsyncadd [#allocation4], %s2028
      %s2031 = sshll.u32 [#allocation5], 4
      %s2032 = int_to_ptr.vmem [resolvable:$true] %s2031
      %2034 = dma.vmem_to_hbm [thread:$0]  %s2032, 128, %s10, [#allocation4]
    $region49: #{encoder_forward.1} parent=1 // pred_fallthru
      _
    // Predicated region
    $region50: #{encoder_forward.1} parent=1 // pred_check
      _
    $region51: #{encoder_forward.1} parent=1 // pred_check_branch
      %2036 = sbr.rel (0) target = $region53
    $region52: #{encoder_forward.1} parent=1 // pred_region
      %2037 = dma.done [#allocation4], 128
    $region53: #{encoder_forward.1} parent=1 // pred_fallthru
      _
    %2038 = vsyncpa [#allocation3], 1
    %2039 = vsyncpa [#allocation4], 1

</llo_original>
